<compile_context>
chip_gen: v7x
topology: tpu7x:2x2x1
jax: 0.10.0
libtpu: 0.0.40
codegen_flags: <defaults>
</compile_context>

<pallas_src>
import functools
import math

import numpy as np
import jax
import jax.numpy as jnp
from jax.experimental import pallas as pl
from jax.experimental.pallas import tpu as pltpu


def _round_up(x, m):
    return ((x + m - 1) // m) * m


def _pick_tile(total, candidates):
    for c in candidates:
        if total % c == 0:
            return c
    return candidates[-1]


# ----------------------------------------------------------------------------
# Pallas kernels
# ----------------------------------------------------------------------------
def _bn_stats_kernel(x_ref, sum_ref, sq_ref):
    """Accumulate per-lane sum / sum-of-squares over M tiles (lane-packed)."""
    @pl.when(pl.program_id(0) == 0)
    def _init():
        sum_ref[...] = jnp.zeros_like(sum_ref)
        sq_ref[...] = jnp.zeros_like(sq_ref)

    x = x_ref[...]
    sum_ref[...] += jnp.sum(x, axis=0, keepdims=True)
    sq_ref[...] += jnp.sum(x * x, axis=0, keepdims=True)


def _bn_norm_kernel(x_ref, scale_ref, shift_ref, o_ref):
    """y = x * scale + shift (per lane); f32 math, bf16 store."""
    o_ref[...] = (x_ref[...] * scale_ref[...] + shift_ref[...]).astype(o_ref.dtype)


def _conv_matmul_kernel(p_ref, w_ref, b_ref, o_ref, acc_ref, *, relu):
    """One (M-tile, N-tile, K-tile) step of out = patches @ w + bias [+ ReLU]."""
    @pl.when(pl.program_id(2) == 0)
    def _init():
        acc_ref[...] = jnp.zeros_like(acc_ref)

    acc_ref[...] += jnp.dot(p_ref[...], w_ref[...],
                            preferred_element_type=jnp.float32)

    @pl.when(pl.program_id(2) == pl.num_programs(2) - 1)
    def _store():
        acc = acc_ref[...] + b_ref[...]
        if relu:
            acc = jnp.maximum(acc, 0.0)
        o_ref[...] = acc.astype(o_ref.dtype)


# ----------------------------------------------------------------------------
# BatchNorm3d (training mode) on a flattened channels-last [M, C] slab
# ----------------------------------------------------------------------------
def batchnorm_flat(x_flat, gamma, beta, eps=1e-5):
    """Tiled, lane-packed batch-norm.  Input [M, C] f32 -> output [M, C] bf16."""
    M, C = x_flat.shape
    fold = 128 // C if (C <= 128 and 128 % C == 0) else 1   # pack rows into lanes
    width = fold * C
    rows = -(-M // fold)
    tm = 512 if rows >= 512 else _round_up(max(rows, 1), 8)
    rows_pad = _round_up(rows, tm)
    m_pad = rows_pad * fold
    n_tiles = rows_pad // tm

    xp = jnp.pad(x_flat.astype(jnp.float32), ((0, m_pad - M), (0, 0)))
    xpk = xp.reshape(rows_pad, width)

    # Pass 1: per-(fold,channel) sum / sumsq accumulated over M tiles.
    s, sq = pl.pallas_call(
        _bn_stats_kernel,
        out_shape=(jax.ShapeDtypeStruct((1, width), jnp.float32),
                   jax.ShapeDtypeStruct((1, width), jnp.float32)),
        grid=(n_tiles,),
        in_specs=[pl.BlockSpec((tm, width), lambda i: (i, 0))],
        out_specs=(pl.BlockSpec((1, width), lambda i: (0, 0)),
                   pl.BlockSpec((1, width), lambda i: (0, 0))),
        compiler_params=pltpu.CompilerParams(dimension_semantics=("arbitrary",)),
    )(xpk)

    s = s.reshape(fold, C).sum(axis=0)
    sq = sq.reshape(fold, C).sum(axis=0)
    mean = s / M
    var = jnp.maximum(sq / M - mean * mean, 0.0)          # biased (training mode)
    scale = gamma.astype(jnp.float32) * jax.lax.rsqrt(var + eps)
    shift = beta.astype(jnp.float32) - mean * scale
    scale_p = jnp.tile(scale, fold).reshape(1, width)
    shift_p = jnp.tile(shift, fold).reshape(1, width)

    # Pass 2: normalize, tiled over M, full 128-lane width.
    y = pl.pallas_call(
        _bn_norm_kernel,
        out_shape=jax.ShapeDtypeStruct((rows_pad, width), jnp.bfloat16),
        grid=(n_tiles,),
        in_specs=[pl.BlockSpec((tm, width), lambda i: (i, 0)),
                  pl.BlockSpec((1, width), lambda i: (0, 0)),
                  pl.BlockSpec((1, width), lambda i: (0, 0))],
        out_specs=pl.BlockSpec((tm, width), lambda i: (i, 0)),
        compiler_params=pltpu.CompilerParams(dimension_semantics=("parallel",)),
    )(xpk, scale_p, shift_p)

    return y.reshape(m_pad, C)[:M]


# ----------------------------------------------------------------------------
# SamePadConvTranspose3d via (conv + depth-to-space) + Pallas matmul
# ----------------------------------------------------------------------------
def same_pad_conv_transpose3d(x, w, bias, stride, relu, out_dtype):
    """SamePadConvTranspose3d forward, channels-last (NDHWC) in/out.

    x:    [N, D, H, W, Cin]
    w:    [Cin, Cout, 4, 4, 4]   (PyTorch ConvTranspose3d weight layout)
    out:  [N, D*sd, H*sh, W*sw, Cout]
    """
    KS = 4
    N, D, H, W, Cin = x.shape
    Cout = w.shape[1]
    sd, sh, sw = stride

    x = x.astype(jnp.bfloat16)
    pads = []
    for s in stride:                        # "same" pre-padding (== F.pad(...))
        p = KS - s
        pads.append((p // 2 + p % 2, p // 2))
    xp = jnp.pad(x, ((0, 0), pads[0], pads[1], pads[2], (0, 0)))

    nd, nh, nw = KS - sd + 1, KS - sh + 1, KS - sw + 1   # unique tap offsets/dim
    n_off = nd * nh * nw
    n_phases = sd * sh * sw
    M = N * D * H * W
    K = n_off * Cin
    n_out = n_phases * Cout

    # Compact im2col over the UNIQUE tap offsets (shared by all output phases).
    taps = []
    for od in range(nd):
        for oh in range(nh):
            for ow in range(nw):
                taps.append(xp[:, od:od + D, oh:oh + H, ow:ow + W, :])
    patches = jnp.stack(taps, axis=4).reshape(M, K)      # bf16, cols = (off, ci)

    # Merged weight: subpixel phases folded into the output-lane dimension.
    # out[m, p*Cout+co] = sum_{(ud,uh,uw),ci} xp[m + (dd+ud, dh+uh, dw+uw)] *
    #                     W[ci, co, KS-1-s*u-r]   with r=(s-p)%s, d = (p != 0).
    wf = w.astype(jnp.float32)
    wm = jnp.zeros((n_off, Cin, n_phases, Cout), jnp.float32)
    for pd in range(sd):
        rd, dd = (sd - pd) % sd, (0 if pd == 0 else 1)
        for ph in range(sh):
            rh, dh = (sh - ph) % sh, (0 if ph == 0 else 1)
            for pw in range(sw):
                rw, dw = (sw - pw) % sw, (0 if pw == 0 else 1)
                p_idx = (pd * sh + ph) * sw + pw
                for ud in range(KS // sd):
                    for uh in range(KS // sh):
                        for uw in range(KS // sw):
                            off_idx = (((dd + ud) * nh + (dh + uh)) * nw
                                       + (dw + uw))
                            wm = wm.at[off_idx, :, p_idx, :].set(
                                wf[:, :,
                                   KS - 1 - sd * ud - rd,
                                   KS - 1 - sh * uh - rh,
                                   KS - 1 - sw * uw - rw])
    wm = wm.reshape(K, n_out)
    bias_m = jnp.tile(bias.astype(jnp.float32), n_phases)         # [n_out]

    # Lane-dense / MXU-friendly tile padding.
    k_pad = _round_up(K, 128)
    n_pad = _round_up(n_out, 128)
    tm = 512 if M >= 2048 else (256 if M >= 256 else _round_up(M, 8))
    m_pad = _round_up(M, tm)
    tk = k_pad if k_pad <= 1024 else _pick_tile(k_pad, (512, 384, 256, 128))
    tn = n_pad if n_pad <= 512 else _pick_tile(n_pad, (640, 512, 384, 256, 128))

    patches = jnp.pad(patches, ((0, m_pad - M), (0, k_pad - K)))
    wm = jnp.pad(wm, ((0, k_pad - K), (0, n_pad - n_out))).astype(jnp.bfloat16)
    bias2 = jnp.pad(bias_m, (0, n_pad - n_out)).reshape(1, n_pad)

    out = pl.pallas_call(
        functools.partial(_conv_matmul_kernel, relu=relu),
        out_shape=jax.ShapeDtypeStruct((m_pad, n_pad), out_dtype),
        grid=(m_pad // tm, n_pad // tn, k_pad // tk),
        in_specs=[
            pl.BlockSpec((tm, tk), lambda i, j, k: (i, k)),
            pl.BlockSpec((tk, tn), lambda i, j, k: (k, j)),
            pl.BlockSpec((1, tn), lambda i, j, k: (0, j)),
        ],
        out_specs=pl.BlockSpec((tm, tn), lambda i, j, k: (i, j)),
        scratch_shapes=[pltpu.VMEM((tm, tn), jnp.float32)],
        compiler_params=pltpu.CompilerParams(
            dimension_semantics=("parallel", "parallel", "arbitrary")),
    )(patches, wm, bias2)

    # Depth-to-space: interleave the per-phase lanes back into spatial dims.
    out = out[:M, :n_out].reshape(N, D, H, W, sd, sh, sw, Cout)
    out = jnp.transpose(out, (0, 1, 4, 2, 5, 3, 6, 7))
    return out.reshape(N, D * sd, H * sh, W * sw, Cout)


# ----------------------------------------------------------------------------
# Decoder parameters + forward
# ----------------------------------------------------------------------------
def init_decoder_params(key, n_hiddens, upsample):
    n_times_upsample = np.array([int(math.log2(d)) for d in upsample])
    max_us = int(n_times_upsample.max())
    keys = jax.random.split(key, 2 * max_us + 2)
    params = {
        "bn_gamma": 1.0 + 0.1 * jax.random.normal(keys[0], (n_hiddens,), jnp.float32),
        "bn_beta": 0.1 * jax.random.normal(keys[1], (n_hiddens,), jnp.float32),
        "convts": [],
    }
    nt = n_times_upsample.copy()
    for i in range(max_us):
        out_channels = 3 if i == max_us - 1 else n_hiddens
        stride = tuple(int(2 if d > 0 else 1) for d in nt)
        fan = n_hiddens * 4 * 4 * 4
        w = jax.random.normal(keys[2 + 2 * i], (n_hiddens, out_channels, 4, 4, 4),
                              jnp.float32) / math.sqrt(fan)
        b = 0.01 * jax.random.normal(keys[3 + 2 * i], (out_channels,), jnp.float32)
        params["convts"].append({"w": w, "b": b, "stride": stride})
        nt = nt - 1
    return params


def decoder_forward(params, x):
    """x: [N, C, D, H, W] (NCDHW, like the PyTorch module). Returns NCDHW."""
    N, C, D, H, W = x.shape
    h = jnp.transpose(x, (0, 2, 3, 4, 1))                       # NCDHW -> NDHWC once
    h = batchnorm_flat(h.reshape(N * D * H * W, C),
                       params["bn_gamma"], params["bn_beta"])   # bf16 [M, C]
    h = h.reshape(N, D, H, W, C)
    n_layers = len(params["convts"])
    for i, layer in enumerate(params["convts"]):
        relu = i < n_layers - 1                                 # ReLU fused in epilogue
        out_dtype = jnp.bfloat16 if relu else jnp.float32
        h = same_pad_conv_transpose3d(h, layer["w"], layer["b"],
                                      layer["stride"], relu, out_dtype)
    return jnp.transpose(h, (0, 4, 1, 2, 3))                    # NDHWC -> NCDHW once


# ----------------------------------------------------------------------------
if __name__ == "__main__":
    key = jax.random.PRNGKey(0)
    kx, kp = jax.random.split(key)

    n_hiddens = 16
    upsample = (2, 4, 4)                 # -> 2 ConvTranspose layers
    N, D, H, W = 2, 2, 4, 4
    x = jax.random.normal(kx, (N, n_hiddens, D, H, W), jnp.float32)

    params = init_decoder_params(kp, n_hiddens, upsample)
    fwd = jax.jit(functools.partial(decoder_forward, params))
    out = jax.block_until_ready(fwd(x))

    expected = (N, 3, D * upsample[0], H * upsample[1], W * upsample[2])
    assert out.shape == expected, (out.shape, expected)
    assert bool(jnp.all(jnp.isfinite(out)))
    print("KERNEL_OK")
</pallas_src>

<mosaic_0001>
module attributes {stable_mosaic.version = 11 : i64} {
  func.func @_bn_stats_kernel(%arg0: i32, %arg1: memref<8x128xf32, #tpu.memory_space<vmem>>, %arg2: memref<1x128xf32, #tpu.memory_space<vmem>>, %arg3: memref<1x128xf32, #tpu.memory_space<vmem>>) attributes {dimension_semantics = [#tpu.dimension_semantics<arbitrary>], iteration_bounds = array<i64: 1>, scalar_prefetch = 0 : i64, scratch_operands = 0 : i64, tpu.core_type = #tpu.core_type<tc>, window_params = [{transform_indices = @transform_0, window_bounds = array<i64: 8, 128>}, {pipeline_mode = #tpu.pipeline_mode<synchronous>, transform_indices = @transform_1, window_bounds = array<i64: 1, 128>}, {pipeline_mode = #tpu.pipeline_mode<synchronous>, transform_indices = @transform_2, window_bounds = array<i64: 1, 128>}]} {
    %c0_i32 = arith.constant 0 : i32
    %0 = arith.cmpi eq, %arg0, %c0_i32 : i32
    %1 = arith.extui %0 : i1 to i32
    %c0_i32_0 = arith.constant 0 : i32
    %2 = arith.cmpi ne, %1, %c0_i32_0 : i32
    scf.if %2 {
      %cst_11 = arith.constant 0.000000e+00 : f32
      %15 = vector.broadcast %cst_11 : f32 to vector<1x128xf32>
      %c0_12 = arith.constant 0 : index
      %c0_13 = arith.constant 0 : index
      %16 = vector.load %arg2[%c0_12, %c0_13] : memref<1x128xf32, #tpu.memory_space<vmem>>, vector<1x128xf32>
      tpu.vector_store %arg2[%c0_12, %c0_13], %15 {strides = array<i32>} : memref<1x128xf32, #tpu.memory_space<vmem>>, vector<1x128xf32>,
      %cst_14 = arith.constant 0.000000e+00 : f32
      %17 = vector.broadcast %cst_14 : f32 to vector<1x128xf32>
      %c0_15 = arith.constant 0 : index
      %c0_16 = arith.constant 0 : index
      %18 = vector.load %arg3[%c0_15, %c0_16] : memref<1x128xf32, #tpu.memory_space<vmem>>, vector<1x128xf32>
      tpu.vector_store %arg3[%c0_15, %c0_16], %17 {strides = array<i32>} : memref<1x128xf32, #tpu.memory_space<vmem>>, vector<1x128xf32>,
    } else {
    }
    %c0 = arith.constant 0 : index
    %c0_1 = arith.constant 0 : index
    %3 = vector.load %arg1[%c0, %c0_1] : memref<8x128xf32, #tpu.memory_space<vmem>>, vector<8x128xf32>
    %c0_2 = arith.constant 0 : index
    %c0_3 = arith.constant 0 : index
    %4 = vector.load %arg2[%c0_2, %c0_3] : memref<1x128xf32, #tpu.memory_space<vmem>>, vector<1x128xf32>
    %cst = arith.constant dense<0.000000e+00> : vector<128xf32>
    %5 = vector.multi_reduction <add>, %3, %cst [0] : vector<8x128xf32> to vector<128xf32>
    %6 = vector.shape_cast %5 : vector<128xf32> to vector<1x128xf32>
    %7 = arith.addf %4, %6 : vector<1x128xf32>
    %c0_4 = arith.constant 0 : index
    %c0_5 = arith.constant 0 : index
    %8 = vector.load %arg2[%c0_4, %c0_5] : memref<1x128xf32, #tpu.memory_space<vmem>>, vector<1x128xf32>
    tpu.vector_store %arg2[%c0_4, %c0_5], %7 {strides = array<i32>} : memref<1x128xf32, #tpu.memory_space<vmem>>, vector<1x128xf32>,
    %c0_6 = arith.constant 0 : index
    %c0_7 = arith.constant 0 : index
    %9 = vector.load %arg3[%c0_6, %c0_7] : memref<1x128xf32, #tpu.memory_space<vmem>>, vector<1x128xf32>
    %10 = arith.mulf %3, %3 : vector<8x128xf32>
    %cst_8 = arith.constant dense<0.000000e+00> : vector<128xf32>
    %11 = vector.multi_reduction <add>, %10, %cst_8 [0] : vector<8x128xf32> to vector<128xf32>
    %12 = vector.shape_cast %11 : vector<128xf32> to vector<1x128xf32>
    %13 = arith.addf %9, %12 : vector<1x128xf32>
    %c0_9 = arith.constant 0 : index
    %c0_10 = arith.constant 0 : index
    %14 = vector.load %arg3[%c0_9, %c0_10] : memref<1x128xf32, #tpu.memory_space<vmem>>, vector<1x128xf32>
    tpu.vector_store %arg3[%c0_9, %c0_10], %13 {strides = array<i32>} : memref<1x128xf32, #tpu.memory_space<vmem>>, vector<1x128xf32>,
    return
  }
  func.func @transform_0(%arg0: i32) -> (i32, i32) {
    %c0_i32 = arith.constant 0 : i32
    %c0_i32_0 = arith.constant 0 : i32
    return %arg0, %c0_i32 : i32, i32
  }
  func.func @transform_1(%arg0: i32) -> (i32, i32) {
    %c0_i32 = arith.constant 0 : i32
    %c0_i32_0 = arith.constant 0 : i32
    %c0_i32_1 = arith.constant 0 : i32
    return %c0_i32, %c0_i32_0 : i32, i32
  }
  func.func @transform_2(%arg0: i32) -> (i32, i32) {
    %c0_i32 = arith.constant 0 : i32
    %c0_i32_0 = arith.constant 0 : i32
    %c0_i32_1 = arith.constant 0 : i32
    return %c0_i32, %c0_i32_0 : i32, i32
  }
}

module attributes {stable_mosaic.version = 11 : i64} {
  func.func @_bn_norm_kernel(%arg0: i32, %arg1: memref<8x128xf32, #tpu.memory_space<vmem>>, %arg2: memref<1x128xf32, #tpu.memory_space<vmem>>, %arg3: memref<1x128xf32, #tpu.memory_space<vmem>>, %arg4: memref<8x128xbf16, #tpu.memory_space<vmem>>) attributes {dimension_semantics = [#tpu.dimension_semantics<parallel>], iteration_bounds = array<i64: 1>, scalar_prefetch = 0 : i64, scratch_operands = 0 : i64, tpu.core_type = #tpu.core_type<tc>, window_params = [{transform_indices = @transform_0, window_bounds = array<i64: 8, 128>}, {pipeline_mode = #tpu.pipeline_mode<synchronous>, transform_indices = @transform_1, window_bounds = array<i64: 1, 128>}, {pipeline_mode = #tpu.pipeline_mode<synchronous>, transform_indices = @transform_2, window_bounds = array<i64: 1, 128>}, {transform_indices = @transform_3, window_bounds = array<i64: 8, 128>}]} {
    %c0 = arith.constant 0 : index
    %c0_0 = arith.constant 0 : index
    %0 = vector.load %arg1[%c0, %c0_0] : memref<8x128xf32, #tpu.memory_space<vmem>>, vector<8x128xf32>
    %c0_1 = arith.constant 0 : index
    %c0_2 = arith.constant 0 : index
    %1 = vector.load %arg2[%c0_1, %c0_2] : memref<1x128xf32, #tpu.memory_space<vmem>>, vector<1x128xf32>
    %2 = vector.broadcast %1 : vector<1x128xf32> to vector<8x128xf32>
    %3 = arith.mulf %0, %2 : vector<8x128xf32>
    %c0_3 = arith.constant 0 : index
    %c0_4 = arith.constant 0 : index
    %4 = vector.load %arg3[%c0_3, %c0_4] : memref<1x128xf32, #tpu.memory_space<vmem>>, vector<1x128xf32>
    %5 = vector.broadcast %4 : vector<1x128xf32> to vector<8x128xf32>
    %6 = arith.addf %3, %5 : vector<8x128xf32>
    %7 = arith.truncf %6 : vector<8x128xf32> to vector<8x128xbf16>
    %c0_5 = arith.constant 0 : index
    %c0_6 = arith.constant 0 : index
    %8 = vector.load %arg4[%c0_5, %c0_6] : memref<8x128xbf16, #tpu.memory_space<vmem>>, vector<8x128xbf16>
    tpu.vector_store %arg4[%c0_5, %c0_6], %7 {strides = array<i32>} : memref<8x128xbf16, #tpu.memory_space<vmem>>, vector<8x128xbf16>,
    return
  }
  func.func @transform_0(%arg0: i32) -> (i32, i32) {
    %c0_i32 = arith.constant 0 : i32
    %c0_i32_0 = arith.constant 0 : i32
    return %arg0, %c0_i32 : i32, i32
  }
  func.func @transform_1(%arg0: i32) -> (i32, i32) {
    %c0_i32 = arith.constant 0 : i32
    %c0_i32_0 = arith.constant 0 : i32
    %c0_i32_1 = arith.constant 0 : i32
    return %c0_i32, %c0_i32_0 : i32, i32
  }
  func.func @transform_2(%arg0: i32) -> (i32, i32) {
    %c0_i32 = arith.constant 0 : i32
    %c0_i32_0 = arith.constant 0 : i32
    %c0_i32_1 = arith.constant 0 : i32
    return %c0_i32, %c0_i32_0 : i32, i32
  }
  func.func @transform_3(%arg0: i32) -> (i32, i32) {
    %c0_i32 = arith.constant 0 : i32
    %c0_i32_0 = arith.constant 0 : i32
    return %arg0, %c0_i32 : i32, i32
  }
}

module attributes {stable_mosaic.version = 11 : i64} {
  func.func @_conv_matmul_kernel(%arg0: i32, %arg1: i32, %arg2: i32, %arg3: memref<64x512xbf16, #tpu.memory_space<vmem>>, %arg4: memref<512x128xbf16, #tpu.memory_space<vmem>>, %arg5: memref<1x128xf32, #tpu.memory_space<vmem>>, %arg6: memref<64x128xbf16, #tpu.memory_space<vmem>>, %arg7: memref<64x128xf32, #tpu.memory_space<vmem>>) attributes {dimension_semantics = [#tpu.dimension_semantics<parallel>, #tpu.dimension_semantics<parallel>, #tpu.dimension_semantics<arbitrary>], iteration_bounds = array<i64: 1, 1, 1>, scalar_prefetch = 0 : i64, scratch_operands = 1 : i64, tpu.core_type = #tpu.core_type<tc>, window_params = [{transform_indices = @transform_0, window_bounds = array<i64: 64, 512>}, {transform_indices = @transform_1, window_bounds = array<i64: 512, 128>}, {transform_indices = @transform_2, window_bounds = array<i64: 1, 128>}, {transform_indices = @transform_3, window_bounds = array<i64: 64, 128>}]} {
    %c0_i32 = arith.constant 0 : i32
    %0 = arith.cmpi eq, %arg2, %c0_i32 : i32
    %1 = arith.extui %0 : i1 to i32
    %c0_i32_0 = arith.constant 0 : i32
    %2 = arith.cmpi ne, %1, %c0_i32_0 : i32
    scf.if %2 {
      %cst_10 = arith.constant 0.000000e+00 : f32
      %12 = vector.broadcast %cst_10 : f32 to vector<64x128xf32>
      %c0_11 = arith.constant 0 : index
      %c0_12 = arith.constant 0 : index
      %13 = vector.load %arg7[%c0_11, %c0_12] : memref<64x128xf32, #tpu.memory_space<vmem>>, vector<64x128xf32>
      tpu.vector_store %arg7[%c0_11, %c0_12], %12 {strides = array<i32>} : memref<64x128xf32, #tpu.memory_space<vmem>>, vector<64x128xf32>,
    } else {
    }
    %c0 = arith.constant 0 : index
    %c0_1 = arith.constant 0 : index
    %3 = vector.load %arg7[%c0, %c0_1] : memref<64x128xf32, #tpu.memory_space<vmem>>, vector<64x128xf32>
    %c0_2 = arith.constant 0 : index
    %c0_3 = arith.constant 0 : index
    %4 = vector.load %arg3[%c0_2, %c0_3] : memref<64x512xbf16, #tpu.memory_space<vmem>>, vector<64x512xbf16>
    %c0_4 = arith.constant 0 : index
    %c0_5 = arith.constant 0 : index
    %5 = vector.load %arg4[%c0_4, %c0_5] : memref<512x128xbf16, #tpu.memory_space<vmem>>, vector<512x128xbf16>
    %cst = arith.constant dense<0.000000e+00> : vector<64x128xf32>
    %6 = tpu.matmul %4, %5, %cst {dimension_numbers = #tpu.dot_dimension_numbers<[1], [0], [0], [1], [0, 0, 1, 1], [], []>} : vector<64x512xbf16>, vector<512x128xbf16>, vector<64x128xf32> -> vector<64x128xf32>
    %7 = arith.addf %3, %6 : vector<64x128xf32>
    %c0_6 = arith.constant 0 : index
    %c0_7 = arith.constant 0 : index
    %8 = vector.load %arg7[%c0_6, %c0_7] : memref<64x128xf32, #tpu.memory_space<vmem>>, vector<64x128xf32>
    tpu.vector_store %arg7[%c0_6, %c0_7], %7 {strides = array<i32>} : memref<64x128xf32, #tpu.memory_space<vmem>>, vector<64x128xf32>,
    %c0_i32_8 = arith.constant 0 : i32
    %9 = arith.cmpi eq, %arg2, %c0_i32_8 : i32
    %10 = arith.extui %9 : i1 to i32
    %c0_i32_9 = arith.constant 0 : i32
    %11 = arith.cmpi ne, %10, %c0_i32_9 : i32
    scf.if %11 {
      %c0_10 = arith.constant 0 : index
      %c0_11 = arith.constant 0 : index
      %12 = vector.load %arg7[%c0_10, %c0_11] : memref<64x128xf32, #tpu.memory_space<vmem>>, vector<64x128xf32>
      %c0_12 = arith.constant 0 : index
      %c0_13 = arith.constant 0 : index
      %13 = vector.load %arg5[%c0_12, %c0_13] : memref<1x128xf32, #tpu.memory_space<vmem>>, vector<1x128xf32>
      %14 = vector.broadcast %13 : vector<1x128xf32> to vector<64x128xf32>
      %15 = arith.addf %12, %14 : vector<64x128xf32>
      %cst_14 = arith.constant 0.000000e+00 : f32
      %16 = vector.broadcast %cst_14 : f32 to vector<64x128xf32>
      %17 = arith.maximumf %15, %16 : vector<64x128xf32>
      %18 = arith.truncf %17 : vector<64x128xf32> to vector<64x128xbf16>
      %c0_15 = arith.constant 0 : index
      %c0_16 = arith.constant 0 : index
      %19 = vector.load %arg6[%c0_15, %c0_16] : memref<64x128xbf16, #tpu.memory_space<vmem>>, vector<64x128xbf16>
      tpu.vector_store %arg6[%c0_15, %c0_16], %18 {strides = array<i32>} : memref<64x128xbf16, #tpu.memory_space<vmem>>, vector<64x128xbf16>,
    } else {
    }
    return
  }
  func.func @transform_0(%arg0: i32, %arg1: i32, %arg2: i32) -> (i32, i32) {
    %c0_i32 = arith.constant 0 : i32
    return %arg0, %arg2 : i32, i32
  }
  func.func @transform_1(%arg0: i32, %arg1: i32, %arg2: i32) -> (i32, i32) {
    %c0_i32 = arith.constant 0 : i32
    return %arg2, %arg1 : i32, i32
  }
  func.func @transform_2(%arg0: i32, %arg1: i32, %arg2: i32) -> (i32, i32) {
    %c0_i32 = arith.constant 0 : i32
    %c0_i32_0 = arith.constant 0 : i32
    return %c0_i32, %arg1 : i32, i32
  }
  func.func @transform_3(%arg0: i32, %arg1: i32, %arg2: i32) -> (i32, i32) {
    %c0_i32 = arith.constant 0 : i32
    return %arg0, %arg1 : i32, i32
  }
}

module attributes {stable_mosaic.version = 11 : i64} {
  func.func @_conv_matmul_kernel(%arg0: i32, %arg1: i32, %arg2: i32, %arg3: memref<256x640xbf16, #tpu.memory_space<vmem>>, %arg4: memref<640x128xbf16, #tpu.memory_space<vmem>>, %arg5: memref<1x128xf32, #tpu.memory_space<vmem>>, %arg6: memref<256x128xf32, #tpu.memory_space<vmem>>, %arg7: memref<256x128xf32, #tpu.memory_space<vmem>>) attributes {dimension_semantics = [#tpu.dimension_semantics<parallel>, #tpu.dimension_semantics<parallel>, #tpu.dimension_semantics<arbitrary>], iteration_bounds = array<i64: 2, 1, 1>, scalar_prefetch = 0 : i64, scratch_operands = 1 : i64, tpu.core_type = #tpu.core_type<tc>, window_params = [{transform_indices = @transform_0, window_bounds = array<i64: 256, 640>}, {transform_indices = @transform_1, window_bounds = array<i64: 640, 128>}, {transform_indices = @transform_2, window_bounds = array<i64: 1, 128>}, {transform_indices = @transform_3, window_bounds = array<i64: 256, 128>}]} {
    %c0_i32 = arith.constant 0 : i32
    %0 = arith.cmpi eq, %arg2, %c0_i32 : i32
    %1 = arith.extui %0 : i1 to i32
    %c0_i32_0 = arith.constant 0 : i32
    %2 = arith.cmpi ne, %1, %c0_i32_0 : i32
    scf.if %2 {
      %cst_10 = arith.constant 0.000000e+00 : f32
      %12 = vector.broadcast %cst_10 : f32 to vector<256x128xf32>
      %c0_11 = arith.constant 0 : index
      %c0_12 = arith.constant 0 : index
      %13 = vector.load %arg7[%c0_11, %c0_12] : memref<256x128xf32, #tpu.memory_space<vmem>>, vector<256x128xf32>
      tpu.vector_store %arg7[%c0_11, %c0_12], %12 {strides = array<i32>} : memref<256x128xf32, #tpu.memory_space<vmem>>, vector<256x128xf32>,
    } else {
    }
    %c0 = arith.constant 0 : index
    %c0_1 = arith.constant 0 : index
    %3 = vector.load %arg7[%c0, %c0_1] : memref<256x128xf32, #tpu.memory_space<vmem>>, vector<256x128xf32>
    %c0_2 = arith.constant 0 : index
    %c0_3 = arith.constant 0 : index
    %4 = vector.load %arg3[%c0_2, %c0_3] : memref<256x640xbf16, #tpu.memory_space<vmem>>, vector<256x640xbf16>
    %c0_4 = arith.constant 0 : index
    %c0_5 = arith.constant 0 : index
    %5 = vector.load %arg4[%c0_4, %c0_5] : memref<640x128xbf16, #tpu.memory_space<vmem>>, vector<640x128xbf16>
    %cst = arith.constant dense<0.000000e+00> : vector<256x128xf32>
    %6 = tpu.matmul %4, %5, %cst {dimension_numbers = #tpu.dot_dimension_numbers<[1], [0], [0], [1], [0, 0, 1, 1], [], []>} : vector<256x640xbf16>, vector<640x128xbf16>, vector<256x128xf32> -> vector<256x128xf32>
    %7 = arith.addf %3, %6 : vector<256x128xf32>
    %c0_6 = arith.constant 0 : index
    %c0_7 = arith.constant 0 : index
    %8 = vector.load %arg7[%c0_6, %c0_7] : memref<256x128xf32, #tpu.memory_space<vmem>>, vector<256x128xf32>
    tpu.vector_store %arg7[%c0_6, %c0_7], %7 {strides = array<i32>} : memref<256x128xf32, #tpu.memory_space<vmem>>, vector<256x128xf32>,
    %c0_i32_8 = arith.constant 0 : i32
    %9 = arith.cmpi eq, %arg2, %c0_i32_8 : i32
    %10 = arith.extui %9 : i1 to i32
    %c0_i32_9 = arith.constant 0 : i32
    %11 = arith.cmpi ne, %10, %c0_i32_9 : i32
    scf.if %11 {
      %c0_10 = arith.constant 0 : index
      %c0_11 = arith.constant 0 : index
      %12 = vector.load %arg7[%c0_10, %c0_11] : memref<256x128xf32, #tpu.memory_space<vmem>>, vector<256x128xf32>
      %c0_12 = arith.constant 0 : index
      %c0_13 = arith.constant 0 : index
      %13 = vector.load %arg5[%c0_12, %c0_13] : memref<1x128xf32, #tpu.memory_space<vmem>>, vector<1x128xf32>
      %14 = vector.broadcast %13 : vector<1x128xf32> to vector<256x128xf32>
      %15 = arith.addf %12, %14 : vector<256x128xf32>
      %c0_14 = arith.constant 0 : index
      %c0_15 = arith.constant 0 : index
      %16 = vector.load %arg6[%c0_14, %c0_15] : memref<256x128xf32, #tpu.memory_space<vmem>>, vector<256x128xf32>
      tpu.vector_store %arg6[%c0_14, %c0_15], %15 {strides = array<i32>} : memref<256x128xf32, #tpu.memory_space<vmem>>, vector<256x128xf32>,
    } else {
    }
    return
  }
  func.func @transform_0(%arg0: i32, %arg1: i32, %arg2: i32) -> (i32, i32) {
    %c0_i32 = arith.constant 0 : i32
    return %arg0, %arg2 : i32, i32
  }
  func.func @transform_1(%arg0: i32, %arg1: i32, %arg2: i32) -> (i32, i32) {
    %c0_i32 = arith.constant 0 : i32
    return %arg2, %arg1 : i32, i32
  }
  func.func @transform_2(%arg0: i32, %arg1: i32, %arg2: i32) -> (i32, i32) {
    %c0_i32 = arith.constant 0 : i32
    %c0_i32_0 = arith.constant 0 : i32
    return %c0_i32, %arg1 : i32, i32
  }
  func.func @transform_3(%arg0: i32, %arg1: i32, %arg2: i32) -> (i32, i32) {
    %c0_i32 = arith.constant 0 : i32
    return %arg0, %arg1 : i32, i32
  }
}

</mosaic_0001>

<llo_original>
// kernel: tile.21
$region0: #{tile.21}
  #allocation0 [shape = 's32[1]{0}', space=sflag, size = 0x4, scoped, tag = 'scoped memory for tile.21']
  %s0 = inlined_call_operand.vmem [shape: f32[16], index: 0, kind: input, shape index: {}]
  %s1 = inlined_call_operand.vmem [shape: f32[8,16], index: 1, kind: output, shape index: {}]
  // Predicated region
  $region2: #{tile.21} parent=0 // pred_check
    _
  $region3: #{tile.21} parent=0 // pred_check_branch
    %3 = sbr.rel (0) target = $region5
  $region4: #{tile.21} parent=0 // pred_region
    _
  $region5: #{tile.21} parent=0 // pred_fallthru
    _
  %v4 = vld [vmem:[%s0] ss:$0 sm:$0xff]
  %5 = vst [vmem:[%s1] sm:$0xff] %v4

// kernel: tile.22
$region0: #{tile.22}
  %s0 = inlined_call_operand.vmem [shape: f32[8,16], index: 0, kind: input, shape index: {}]
  %s1 = inlined_call_operand.vmem [shape: f32[1,128], index: 1, kind: output, shape index: {}]
  $region1: #{tile.22} parent=0
    #allocation0 [shape = 'u8[4096]{0}', space=vmem, size = 0x1000, scoped, tag = 'scoped mem for output reshape']
    %v2 = vld [vmem:[%s0] sm:$0x1]
    %vm3 = vcmask 130048
    %4 = vst.msk [vmem:[#allocation0] sm:$0x1] %vm3, %v2
    %s5 = scalar_lea.vmem %s0, 7
    %v6 = vld [vmem:[%s5] sm:$0x1]
    %7 = vrot.lane.b32.xlu0 %v6, 112
    %v8 = vpop.permute.xlu0 %7
    %vm9 = vcmask 1048448
    %10 = vst.msk [vmem:[#allocation0] sm:$0x1] %vm9, %v8
    %s11 = scalar_lea.vmem %s0, 6
    %v12 = vld [vmem:[%s11] sm:$0x1]
    %13 = vrot.lane.b32.xlu0 %v12, 96
    %v14 = vpop.permute.xlu0 %13
    %vm15 = vcmask 917248
    %16 = vst.msk [vmem:[#allocation0] sm:$0x1] %vm15, %v14
    %s17 = scalar_lea.vmem %s0, 5
    %v18 = vld [vmem:[%s17] sm:$0x1]
    %19 = vrot.lane.b32.xlu0 %v18, 80
    %v20 = vpop.permute.xlu0 %19
    %vm21 = vcmask 786048
    %22 = vst.msk [vmem:[#allocation0] sm:$0x1] %vm21, %v20
    %s23 = scalar_lea.vmem %s0, 4
    %v24 = vld [vmem:[%s23] sm:$0x1]
    %25 = vrot.lane.b32.xlu0 %v24, 64
    %v26 = vpop.permute.xlu0 %25
    %vm27 = vcmask 654848
    %28 = vst.msk [vmem:[#allocation0] sm:$0x1] %vm27, %v26
    %s29 = scalar_lea.vmem %s0, 3
    %v30 = vld [vmem:[%s29] sm:$0x1]
    %31 = vrot.lane.b32.xlu0 %v30, 48
    %v32 = vpop.permute.xlu0 %31
    %vm33 = vcmask 523648
    %34 = vst.msk [vmem:[#allocation0] sm:$0x1] %vm33, %v32
    %s35 = scalar_lea.vmem %s0, 2
    %v36 = vld [vmem:[%s35] sm:$0x1]
    %37 = vrot.lane.b32.xlu0 %v36, 32
    %v38 = vpop.permute.xlu0 %37
    %vm39 = vcmask 392448
    %40 = vst.msk [vmem:[#allocation0] sm:$0x1] %vm39, %v38
    %s41 = scalar_lea.vmem %s0, 1
    %v42 = vld [vmem:[%s41] sm:$0x1]
    %43 = vrot.lane.b32.xlu0 %v42, 16
    %v44 = vpop.permute.xlu0 %43
    %vm45 = vcmask 261248
    %46 = vst.msk [vmem:[#allocation0] sm:$0x1] %vm45, %v44
    %s48 = sshllo.u32 0, 1
    %v50 = vld [vmem:[#allocation0] sm:%s48]
    %s51 = sshllo.u32 0, 1
    %52 = vst [vmem:[%s1] sm:%s51] %v50

// kernel: decoder_forward.4
$region0: #{decoder_forward.4}
  #allocation0 [shape = 'u32[]', space=smem, size = 0x4, offset = 0x4, fixed_abs, tag = 'smem constant byte address 0x4 - core index']
  #allocation1 [shape = 'u32[144,128]{1,0:T(1,128)}', space=vmem, size = 0x12000, scoped, tag = 'internal scratch']
  %s0 = inlined_call_operand.vmem [shape: f32[8,128], index: 0, kind: input, shape index: {}]
  %s1 = inlined_call_operand.vmem [shape: f32[1,128], index: 1, kind: output, shape index: {0}]
  %s2 = inlined_call_operand.vmem [shape: f32[1,128], index: 2, kind: output, shape index: {1}]
  %3 = xla_tuple %s1, %s2
  %s4 = sld [smem:[#allocation0]]
  $region26: #{decoder_forward.4} parent=0
    _
  %s6 = ssub.s32 1, %s4
  %s7 = scalar_select 0, %s6, %s4
  // Predicated region
  $region2: #{decoder_forward.4} parent=0 // pred_check
    _
  $region3: #{decoder_forward.4} parent=0 // pred_check_branch
    %9 = sbr.rel (0) target = $region5
  $region4: #{decoder_forward.4} parent=0 // pred_region
    _
  $region5: #{decoder_forward.4} parent=0 // pred_fallthru
    _
  %p10 = scmp.eq.s32.totalorder 0, 0
  // Predicated region
  $region6: #{decoder_forward.4} parent=0 // pred_check
    %p11 = pneg %p10
  $region7: #{decoder_forward.4} parent=0 // pred_check_branch
    %13 = sbr.rel (%p11) target = $region9
  $region8: #{decoder_forward.4} parent=0 // pred_region
    %14 = vst [vmem:[%s1] sm:$0x1] 0.0
    %15 = vst [vmem:[%s2] sm:$0x1] 0.0
  $region9: #{decoder_forward.4} parent=0 // pred_fallthru
    _
  %v16 = vld [vmem:[%s0] sm:$0xff]
  %v17 = vld [vmem:[%s1] sm:$0x1]
  %v18 = vrot.slane %v16, 4
  %v19 = vadd.f32 %v16, %v18
  %v20 = vrot.slane %v19, 2
  %v21 = vadd.f32 %v19, %v20
  %v22 = vrot.slane %v21, 1
  %v23 = vadd.f32 %v21, %v22
  %v24 = vadd.f32 %v17, %v23
  %25 = vst [vmem:[%s1] sm:$0x1] %v24
  %v26 = vld [vmem:[%s2] sm:$0x1]
  %v27 = vmul.f32 %v16, %v16
  %v28 = vrot.slane %v27, 4
  %v29 = vadd.f32 %v27, %v28
  %v30 = vrot.slane %v29, 2
  %v31 = vadd.f32 %v29, %v30
  %v32 = vrot.slane %v31, 1
  %v33 = vadd.f32 %v31, %v32
  %v34 = vadd.f32 %v26, %v33
  %35 = vst [vmem:[%s2] sm:$0x1] %v34
  // Predicated region
  $region10: #{decoder_forward.4} parent=0 // pred_check
    _
  $region11: #{decoder_forward.4} parent=0 // pred_check_branch
    %37 = sbr.rel (0) target = $region13
  $region12: #{decoder_forward.4} parent=0 // pred_region
    _
  $region13: #{decoder_forward.4} parent=0 // pred_fallthru
    _
  // Predicated region
  $region14: #{decoder_forward.4} parent=0 // pred_check
    _
  $region15: #{decoder_forward.4} parent=0 // pred_check_branch
    %39 = sbr.rel (0) target = $region17
  $region16: #{decoder_forward.4} parent=0 // pred_region
    _
  $region17: #{decoder_forward.4} parent=0 // pred_fallthru
    _
  // Predicated region
  $region18: #{decoder_forward.4} parent=0 // pred_check
    _
  $region19: #{decoder_forward.4} parent=0 // pred_check_branch
    %41 = sbr.rel (0) target = $region21
  $region20: #{decoder_forward.4} parent=0 // pred_region
    _
  $region21: #{decoder_forward.4} parent=0 // pred_fallthru
    _
  // Predicated region
  $region22: #{decoder_forward.4} parent=0 // pred_check
    _
  $region23: #{decoder_forward.4} parent=0 // pred_check_branch
    %43 = sbr.rel (0) target = $region25
  $region24: #{decoder_forward.4} parent=0 // pred_region
    _
  $region25: #{decoder_forward.4} parent=0 // pred_fallthru
    _

// kernel: decoder_forward.5
$region0: #{decoder_forward.5}
  #allocation0 [shape = 'u32[]', space=smem, size = 0x4, offset = 0x4, fixed_abs, tag = 'smem constant byte address 0x4 - core index']
  #allocation1 [shape = 'u32[144,128]{1,0:T(1,128)}', space=vmem, size = 0x12000, scoped, tag = 'internal scratch']
  %s0 = inlined_call_operand.vmem [shape: f32[8,128], index: 0, kind: input, shape index: {}]
  %s1 = inlined_call_operand.vmem [shape: f32[1,128], index: 1, kind: input, shape index: {}]
  %s2 = inlined_call_operand.vmem [shape: f32[1,128], index: 2, kind: input, shape index: {}]
  %s3 = inlined_call_operand.vmem [shape: bf16[8,128], index: 3, kind: output, shape index: {}]
  %s4 = sld [smem:[#allocation0]]
  $region22: #{decoder_forward.5} parent=0
    _
  %s6 = ssub.s32 1, %s4
  %s7 = scalar_select 0, %s6, %s4
  // Predicated region
  $region2: #{decoder_forward.5} parent=0 // pred_check
    _
  $region3: #{decoder_forward.5} parent=0 // pred_check_branch
    %9 = sbr.rel (0) target = $region5
  $region4: #{decoder_forward.5} parent=0 // pred_region
    _
  $region5: #{decoder_forward.5} parent=0 // pred_fallthru
    _
  // Predicated region
  $region6: #{decoder_forward.5} parent=0 // pred_check
    _
  $region7: #{decoder_forward.5} parent=0 // pred_check_branch
    %11 = sbr.rel (0) target = $region9
  $region8: #{decoder_forward.5} parent=0 // pred_region
    _
  $region9: #{decoder_forward.5} parent=0 // pred_fallthru
    _
  // Predicated region
  $region10: #{decoder_forward.5} parent=0 // pred_check
    _
  $region11: #{decoder_forward.5} parent=0 // pred_check_branch
    %13 = sbr.rel (0) target = $region13
  $region12: #{decoder_forward.5} parent=0 // pred_region
    _
  $region13: #{decoder_forward.5} parent=0 // pred_fallthru
    _
  %v14 = vld [vmem:[%s0] sm:$0xff]
  %v15 = vld [vmem:[%s1] sm:$0x1]
  %v17 = vlaneseq
  %v18 = vshrl.u32 %v17, 7
  %v19 = vsub.s32 0, %v18
  %v20 = vrot.slane %v15, %v19
  %v22 = vmul.f32 %v14, %v20
  %v23 = vld [vmem:[%s2] sm:$0x1]
  %v25 = vlaneseq
  %v26 = vshrl.u32 %v25, 7
  %v27 = vsub.s32 0, %v26
  %v28 = vrot.slane %v23, %v27
  %v30 = vadd.f32 %v22, %v28
  %v31 = vpack.c.bf16 %v30, %v30
  %32 = vst [vmem:[%s3] sm:$0xf] %v31
  // Predicated region
  $region14: #{decoder_forward.5} parent=0 // pred_check
    _
  $region15: #{decoder_forward.5} parent=0 // pred_check_branch
    %34 = sbr.rel (0) target = $region17
  $region16: #{decoder_forward.5} parent=0 // pred_region
    _
  $region17: #{decoder_forward.5} parent=0 // pred_fallthru
    _
  // Predicated region
  $region18: #{decoder_forward.5} parent=0 // pred_check
    _
  $region19: #{decoder_forward.5} parent=0 // pred_check_branch
    %36 = sbr.rel (0) target = $region21
  $region20: #{decoder_forward.5} parent=0 // pred_region
    _
  $region21: #{decoder_forward.5} parent=0 // pred_fallthru
    _

// kernel: tile.30
$region0: #{tile.30}
  #allocation2 [shape = 's32[1]{0}', space=sflag, size = 0x4, scoped, tag = 'scoped memory for tile.30']
  %s0 = inlined_call_operand.hbm [shape: f32[16], index: 0, kind: input, shape index: {}]
  %s1 = inlined_call_operand.vmem [shape: f32[8,16], index: 1, kind: output, shape index: {}]
  $region1: #{tile.30} parent=0
    #allocation0 [shape = 'u8[512]{0}', space=vmem, size = 0x400, scoped, tag = 'operand span for operand 0']
    #allocation1 [shape = 's32[1]{0}', space=sflag, size = 0x4, scoped, tag = 'scoped memory for tile.30']
    %2 = vsyncpa [#allocation1], 0
    // Predicated region
    $region2: #{tile.30} parent=1 // pred_check
      _
    $region3: #{tile.30} parent=1 // pred_check_branch
      %4 = sbr.rel (0) target = $region5
    $region4: #{tile.30} parent=1 // pred_region
      %s6 = ssub.s32 16, 16
      %7 = vsyncadd [#allocation1], %s6
      %s9 = sshll.u32 [#allocation0], 4
      %s10 = int_to_ptr.vmem [resolvable:$true] %s9
      %12 = dma.hbm_to_vmem [thread:$0]  %s0, 16, %s10, [#allocation1]
    $region5: #{tile.30} parent=1 // pred_fallthru
      _
    // Predicated region
    $region6: #{tile.30} parent=1 // pred_check
      _
    $region7: #{tile.30} parent=1 // pred_check_branch
      %14 = sbr.rel (0) target = $region9
    $region8: #{tile.30} parent=1 // pred_region
      %15 = dma.done [#allocation1], 16
    $region9: #{tile.30} parent=1 // pred_fallthru
      _
    %v16 = vld [vmem:[#allocation0] ss:$0 sm:$0xff]
    %17 = vst [vmem:[%s1] sm:$0xff] %v16
    %18 = vsyncpa [#allocation1], 1

// kernel: decoder_forward.6
$region0: #{decoder_forward.6}
  #allocation0 [shape = 'u32[]', space=smem, size = 0x4, offset = 0x4, fixed_abs, tag = 'smem constant byte address 0x4 - core index']
  #allocation1 [shape = 'u32[144,128]{1,0:T(1,128)}', space=vmem, size = 0x12000, scoped, tag = 'internal scratch']
  #allocation2 [shape = 'f32[64,128]{1,0:T(8,128)}', space=vmem, size = 0x8000, scoped, tag = 'scratch operand']
  %s0 = inlined_call_operand.vmem [shape: bf16[64,512], index: 0, kind: input, shape index: {}]
  %s1 = inlined_call_operand.hbm [shape: bf16[512,128], index: 1, kind: input, shape index: {}]
  %s2 = inlined_call_operand.vmem [shape: f32[1,128], index: 2, kind: input, shape index: {}]
  %s3 = inlined_call_operand.vmem [shape: bf16[64,128], index: 3, kind: output, shape index: {}]
  %s4 = sld [smem:[#allocation0]]
  $region34: #{decoder_forward.6} parent=0
    _
  %s6 = ssub.s32 1, %s4
  %s7 = scalar_select 0, %s6, %s4
  $region1: #{decoder_forward.6} parent=0
    #allocation3 [shape = 'u8[131072]{0}', space=vmem, size = 0x20000, scoped, tag = 'input window, operand 1, single buffered']
    #allocation4 [shape = 's32[1]{0}', space=sflag, size = 0x4, scoped, tag = 'scoped memory for decoder_forward.6']
    %8 = vsyncpa [#allocation4], 0
    // Predicated region
    $region2: #{decoder_forward.6} parent=1 // pred_check
      _
    $region3: #{decoder_forward.6} parent=1 // pred_check_branch
      %10 = sbr.rel (0) target = $region5
    $region4: #{decoder_forward.6} parent=1 // pred_region
      _
    $region5: #{decoder_forward.6} parent=1 // pred_fallthru
      _
    // Predicated region
    $region6: #{decoder_forward.6} parent=1 // pred_check
      _
    $region7: #{decoder_forward.6} parent=1 // pred_check_branch
      %12 = sbr.rel (0) target = $region9
    $region8: #{decoder_forward.6} parent=1 // pred_region
      %s14 = ssub.s32 4096, 4096
      %15 = vsyncadd [#allocation4], %s14
      %s16 = sshll.u32 [#allocation3], 4
      %s17 = int_to_ptr.vmem [resolvable:$true] %s16
      %22 = dma.hbm_to_vmem [thread:$0]  %s1, 4096, %s17, [#allocation4], 64, 64, 4
    $region9: #{decoder_forward.6} parent=1 // pred_fallthru
      _
    // Predicated region
    $region10: #{decoder_forward.6} parent=1 // pred_check
      _
    $region11: #{decoder_forward.6} parent=1 // pred_check_branch
      %24 = sbr.rel (0) target = $region13
    $region12: #{decoder_forward.6} parent=1 // pred_region
      _
    $region13: #{decoder_forward.6} parent=1 // pred_fallthru
      _
    // Predicated region
    $region14: #{decoder_forward.6} parent=1 // pred_check
      _
    $region15: #{decoder_forward.6} parent=1 // pred_check_branch
      %26 = sbr.rel (0) target = $region17
    $region16: #{decoder_forward.6} parent=1 // pred_region
      %27 = dma.done [#allocation4], 4096
    $region17: #{decoder_forward.6} parent=1 // pred_fallthru
      _
    %p29 = scmp.eq.s32.totalorder 0, 0
    // Predicated region
    $region18: #{decoder_forward.6} parent=1 // pred_check
      %p30 = pneg %p29
    $region19: #{decoder_forward.6} parent=1 // pred_check_branch
      %32 = sbr.rel (%p30) target = $region21
    $region20: #{decoder_forward.6} parent=1 // pred_region
      %33 = vst [vmem:[#allocation2] sm:$0xff] 0.0
      %34 = vst [vmem:[#allocation2 + $0x8] sm:$0xff] 0.0
      %35 = vst [vmem:[#allocation2 + $0x10] sm:$0xff] 0.0
      %36 = vst [vmem:[#allocation2 + $0x18] sm:$0xff] 0.0
      %37 = vst [vmem:[#allocation2 + $0x20] sm:$0xff] 0.0
      %38 = vst [vmem:[#allocation2 + $0x28] sm:$0xff] 0.0
      %39 = vst [vmem:[#allocation2 + $0x30] sm:$0xff] 0.0
      %40 = vst [vmem:[#allocation2 + $0x38] sm:$0xff] 0.0
    $region21: #{decoder_forward.6} parent=1 // pred_fallthru
      _
    %v41 = vld [vmem:[#allocation2] sm:$0xff]
    %v42 = vld [vmem:[#allocation2 + $0x8] sm:$0xff]
    %v43 = vld [vmem:[#allocation2 + $0x10] sm:$0xff]
    %v44 = vld [vmem:[#allocation2 + $0x18] sm:$0xff]
    %v45 = vld [vmem:[#allocation2 + $0x20] sm:$0xff]
    %v46 = vld [vmem:[#allocation2 + $0x28] sm:$0xff]
    %v47 = vld [vmem:[#allocation2 + $0x30] sm:$0xff]
    %v48 = vld [vmem:[#allocation2 + $0x38] sm:$0xff]
    %v49 = vld [vmem:[%s0] sm:$0xff]
    %v50 = vld [vmem:[%s0 + $0x8] sm:$0xff]
    %v51 = vld [vmem:[%s0 + $0x10] sm:$0xff]
    %v52 = vld [vmem:[%s0 + $0x18] sm:$0xff]
    %v53 = vld [vmem:[%s0 + $0x20] sm:$0xff]
    %v54 = vld [vmem:[%s0 + $0x28] sm:$0xff]
    %v55 = vld [vmem:[%s0 + $0x30] sm:$0xff]
    %v56 = vld [vmem:[%s0 + $0x38] sm:$0xff]
    %v57 = vld [vmem:[%s0 + $0x40] sm:$0xff]
    %v58 = vld [vmem:[%s0 + $0x48] sm:$0xff]
    %v59 = vld [vmem:[%s0 + $0x50] sm:$0xff]
    %v60 = vld [vmem:[%s0 + $0x58] sm:$0xff]
    %v61 = vld [vmem:[%s0 + $0x60] sm:$0xff]
    %v62 = vld [vmem:[%s0 + $0x68] sm:$0xff]
    %v63 = vld [vmem:[%s0 + $0x70] sm:$0xff]
    %v64 = vld [vmem:[%s0 + $0x78] sm:$0xff]
    %v65 = vld [vmem:[#allocation3] sm:$0xf]
    %v66 = vld [vmem:[#allocation3 + $0x4] sm:$0xf]
    %v67 = vld [vmem:[#allocation3 + $0x8] sm:$0xf]
    %v68 = vld [vmem:[#allocation3 + $0xc] sm:$0xf]
    %v69 = vld [vmem:[#allocation3 + $0x10] sm:$0xf]
    %v70 = vld [vmem:[#allocation3 + $0x14] sm:$0xf]
    %v71 = vld [vmem:[#allocation3 + $0x18] sm:$0xf]
    %v72 = vld [vmem:[#allocation3 + $0x1c] sm:$0xf]
    %v73 = vld [vmem:[#allocation3 + $0x20] sm:$0xf]
    %v74 = vld [vmem:[#allocation3 + $0x24] sm:$0xf]
    %v75 = vld [vmem:[#allocation3 + $0x28] sm:$0xf]
    %v76 = vld [vmem:[#allocation3 + $0x2c] sm:$0xf]
    %v77 = vld [vmem:[#allocation3 + $0x30] sm:$0xf]
    %v78 = vld [vmem:[#allocation3 + $0x34] sm:$0xf]
    %v79 = vld [vmem:[#allocation3 + $0x38] sm:$0xf]
    %v80 = vld [vmem:[#allocation3 + $0x3c] sm:$0xf]
    %v81 = vld [vmem:[#allocation3 + $0x40] sm:$0xf]
    %v82 = vld [vmem:[#allocation3 + $0x44] sm:$0xf]
    %v83 = vld [vmem:[#allocation3 + $0x48] sm:$0xf]
    %v84 = vld [vmem:[#allocation3 + $0x4c] sm:$0xf]
    %v85 = vld [vmem:[#allocation3 + $0x50] sm:$0xf]
    %v86 = vld [vmem:[#allocation3 + $0x54] sm:$0xf]
    %v87 = vld [vmem:[#allocation3 + $0x58] sm:$0xf]
    %v88 = vld [vmem:[#allocation3 + $0x5c] sm:$0xf]
    %v89 = vld [vmem:[#allocation3 + $0x60] sm:$0xf]
    %v90 = vld [vmem:[#allocation3 + $0x64] sm:$0xf]
    %v91 = vld [vmem:[#allocation3 + $0x68] sm:$0xf]
    %v92 = vld [vmem:[#allocation3 + $0x6c] sm:$0xf]
    %v93 = vld [vmem:[#allocation3 + $0x70] sm:$0xf]
    %v94 = vld [vmem:[#allocation3 + $0x74] sm:$0xf]
    %v95 = vld [vmem:[#allocation3 + $0x78] sm:$0xf]
    %v96 = vld [vmem:[#allocation3 + $0x7c] sm:$0xf]
    %v97 = vld [vmem:[#allocation3 + $0x80] sm:$0xf]
    %v98 = vld [vmem:[#allocation3 + $0x84] sm:$0xf]
    %v99 = vld [vmem:[#allocation3 + $0x88] sm:$0xf]
    %v100 = vld [vmem:[#allocation3 + $0x8c] sm:$0xf]
    %v101 = vld [vmem:[#allocation3 + $0x90] sm:$0xf]
    %v102 = vld [vmem:[#allocation3 + $0x94] sm:$0xf]
    %v103 = vld [vmem:[#allocation3 + $0x98] sm:$0xf]
    %v104 = vld [vmem:[#allocation3 + $0x9c] sm:$0xf]
    %v105 = vld [vmem:[#allocation3 + $0xa0] sm:$0xf]
    %v106 = vld [vmem:[#allocation3 + $0xa4] sm:$0xf]
    %v107 = vld [vmem:[#allocation3 + $0xa8] sm:$0xf]
    %v108 = vld [vmem:[#allocation3 + $0xac] sm:$0xf]
    %v109 = vld [vmem:[#allocation3 + $0xb0] sm:$0xf]
    %v110 = vld [vmem:[#allocation3 + $0xb4] sm:$0xf]
    %v111 = vld [vmem:[#allocation3 + $0xb8] sm:$0xf]
    %v112 = vld [vmem:[#allocation3 + $0xbc] sm:$0xf]
    %v113 = vld [vmem:[#allocation3 + $0xc0] sm:$0xf]
    %v114 = vld [vmem:[#allocation3 + $0xc4] sm:$0xf]
    %v115 = vld [vmem:[#allocation3 + $0xc8] sm:$0xf]
    %v116 = vld [vmem:[#allocation3 + $0xcc] sm:$0xf]
    %v117 = vld [vmem:[#allocation3 + $0xd0] sm:$0xf]
    %v118 = vld [vmem:[#allocation3 + $0xd4] sm:$0xf]
    %v119 = vld [vmem:[#allocation3 + $0xd8] sm:$0xf]
    %v120 = vld [vmem:[#allocation3 + $0xdc] sm:$0xf]
    %v121 = vld [vmem:[#allocation3 + $0xe0] sm:$0xf]
    %v122 = vld [vmem:[#allocation3 + $0xe4] sm:$0xf]
    %v123 = vld [vmem:[#allocation3 + $0xe8] sm:$0xf]
    %v124 = vld [vmem:[#allocation3 + $0xec] sm:$0xf]
    %v125 = vld [vmem:[#allocation3 + $0xf0] sm:$0xf]
    %v126 = vld [vmem:[#allocation3 + $0xf4] sm:$0xf]
    %v127 = vld [vmem:[#allocation3 + $0xf8] sm:$0xf]
    %v128 = vld [vmem:[#allocation3 + $0xfc] sm:$0xf]
    %v145 = vunpack.c.l.b16 %v49
    %v146 = vunpack.c.h.b16 %v49
    %v147 = vunpack.c.l.b16 %v50
    %v148 = vunpack.c.h.b16 %v50
    %v149 = vunpack.c.l.b16 %v51
    %v150 = vunpack.c.h.b16 %v51
    %v151 = vunpack.c.l.b16 %v52
    %v152 = vunpack.c.h.b16 %v52
    %v153 = vunpack.c.l.b16 %v53
    %v154 = vunpack.c.h.b16 %v53
    %v155 = vunpack.c.l.b16 %v54
    %v156 = vunpack.c.h.b16 %v54
    %v157 = vunpack.c.l.b16 %v55
    %v158 = vunpack.c.h.b16 %v55
    %v159 = vunpack.c.l.b16 %v56
    %v160 = vunpack.c.h.b16 %v56
    %v161 = vunpack.c.l.b16 %v57
    %v162 = vunpack.c.h.b16 %v57
    %v163 = vunpack.c.l.b16 %v58
    %v164 = vunpack.c.h.b16 %v58
    %v165 = vunpack.c.l.b16 %v59
    %v166 = vunpack.c.h.b16 %v59
    %v167 = vunpack.c.l.b16 %v60
    %v168 = vunpack.c.h.b16 %v60
    %v169 = vunpack.c.l.b16 %v61
    %v170 = vunpack.c.h.b16 %v61
    %v171 = vunpack.c.l.b16 %v62
    %v172 = vunpack.c.h.b16 %v62
    %v173 = vunpack.c.l.b16 %v63
    %v174 = vunpack.c.h.b16 %v63
    %v175 = vunpack.c.l.b16 %v64
    %v176 = vunpack.c.h.b16 %v64
    %v177 = vpack.c.b16 %v149, %v145
    %v178 = vpack.c.b16 %v150, %v146
    %v179 = vpack.c.b16 %v151, %v147
    %v180 = vpack.c.b16 %v152, %v148
    %v181 = vpack.c.b16 %v157, %v153
    %v182 = vpack.c.b16 %v158, %v154
    %v183 = vpack.c.b16 %v159, %v155
    %v184 = vpack.c.b16 %v160, %v156
    %v185 = vpack.c.b16 %v165, %v161
    %v186 = vpack.c.b16 %v166, %v162
    %v187 = vpack.c.b16 %v167, %v163
    %v188 = vpack.c.b16 %v168, %v164
    %v189 = vpack.c.b16 %v173, %v169
    %v190 = vpack.c.b16 %v174, %v170
    %v191 = vpack.c.b16 %v175, %v171
    %v192 = vpack.c.b16 %v176, %v172
    %v273 = vunpack.c.l.b16 %v65
    %v274 = vunpack.c.l.b16 %v66
    %v275 = vunpack.c.l.b16 %v67
    %v276 = vunpack.c.l.b16 %v68
    %v277 = vunpack.c.l.b16 %v69
    %v278 = vunpack.c.l.b16 %v70
    %v279 = vunpack.c.l.b16 %v71
    %v280 = vunpack.c.l.b16 %v72
    %v281 = vunpack.c.l.b16 %v73
    %v282 = vunpack.c.l.b16 %v74
    %v283 = vunpack.c.l.b16 %v75
    %v284 = vunpack.c.l.b16 %v76
    %v285 = vunpack.c.l.b16 %v77
    %v286 = vunpack.c.l.b16 %v78
    %v287 = vunpack.c.l.b16 %v79
    %v288 = vunpack.c.l.b16 %v80
    %v289 = vunpack.c.l.b16 %v81
    %v290 = vunpack.c.l.b16 %v82
    %v291 = vunpack.c.l.b16 %v83
    %v292 = vunpack.c.l.b16 %v84
    %v293 = vunpack.c.l.b16 %v85
    %v294 = vunpack.c.l.b16 %v86
    %v295 = vunpack.c.l.b16 %v87
    %v296 = vunpack.c.l.b16 %v88
    %v297 = vunpack.c.l.b16 %v89
    %v298 = vunpack.c.l.b16 %v90
    %v299 = vunpack.c.l.b16 %v91
    %v300 = vunpack.c.l.b16 %v92
    %v301 = vunpack.c.l.b16 %v93
    %v302 = vunpack.c.l.b16 %v94
    %v303 = vunpack.c.l.b16 %v95
    %v304 = vunpack.c.l.b16 %v96
    %v305 = vunpack.c.l.b16 %v97
    %v306 = vunpack.c.l.b16 %v98
    %v307 = vunpack.c.l.b16 %v99
    %v308 = vunpack.c.l.b16 %v100
    %v309 = vunpack.c.l.b16 %v101
    %v310 = vunpack.c.l.b16 %v102
    %v311 = vunpack.c.l.b16 %v103
    %v312 = vunpack.c.l.b16 %v104
    %v313 = vunpack.c.l.b16 %v105
    %v314 = vunpack.c.l.b16 %v106
    %v315 = vunpack.c.l.b16 %v107
    %v316 = vunpack.c.l.b16 %v108
    %v317 = vunpack.c.l.b16 %v109
    %v318 = vunpack.c.l.b16 %v110
    %v319 = vunpack.c.l.b16 %v111
    %v320 = vunpack.c.l.b16 %v112
    %v321 = vunpack.c.l.b16 %v113
    %v322 = vunpack.c.l.b16 %v114
    %v323 = vunpack.c.l.b16 %v115
    %v324 = vunpack.c.l.b16 %v116
    %v325 = vunpack.c.l.b16 %v117
    %v326 = vunpack.c.l.b16 %v118
    %v327 = vunpack.c.l.b16 %v119
    %v328 = vunpack.c.l.b16 %v120
    %v329 = vunpack.c.l.b16 %v121
    %v330 = vunpack.c.l.b16 %v122
    %v331 = vunpack.c.l.b16 %v123
    %v332 = vunpack.c.l.b16 %v124
    %v333 = vunpack.c.l.b16 %v125
    %v334 = vunpack.c.l.b16 %v126
    %v335 = vunpack.c.l.b16 %v127
    %v336 = vunpack.c.l.b16 %v128
    %v337 = vpack.c.b16 %v274, %v273
    %v338 = vpack.c.b16 %v276, %v275
    %v339 = vpack.c.b16 %v278, %v277
    %v340 = vpack.c.b16 %v280, %v279
    %v341 = vpack.c.b16 %v282, %v281
    %v342 = vpack.c.b16 %v284, %v283
    %v343 = vpack.c.b16 %v286, %v285
    %v344 = vpack.c.b16 %v288, %v287
    %v345 = vpack.c.b16 %v290, %v289
    %v346 = vpack.c.b16 %v292, %v291
    %v347 = vpack.c.b16 %v294, %v293
    %v348 = vpack.c.b16 %v296, %v295
    %v349 = vpack.c.b16 %v298, %v297
    %v350 = vpack.c.b16 %v300, %v299
    %v351 = vpack.c.b16 %v302, %v301
    %v352 = vpack.c.b16 %v304, %v303
    %v353 = vpack.c.b16 %v306, %v305
    %v354 = vpack.c.b16 %v308, %v307
    %v355 = vpack.c.b16 %v310, %v309
    %v356 = vpack.c.b16 %v312, %v311
    %v357 = vpack.c.b16 %v314, %v313
    %v358 = vpack.c.b16 %v316, %v315
    %v359 = vpack.c.b16 %v318, %v317
    %v360 = vpack.c.b16 %v320, %v319
    %v361 = vpack.c.b16 %v322, %v321
    %v362 = vpack.c.b16 %v324, %v323
    %v363 = vpack.c.b16 %v326, %v325
    %v364 = vpack.c.b16 %v328, %v327
    %v365 = vpack.c.b16 %v330, %v329
    %v366 = vpack.c.b16 %v332, %v331
    %v367 = vpack.c.b16 %v334, %v333
    %v368 = vpack.c.b16 %v336, %v335
    %401 = vmatprep.subr.bf16.mxu0 0
    %402 = vmatpush1.bf16.msra.mxu0 %v337
    %403 = vmatprep.subr.bf16.mxu0 0
    %404 = vmatpush1.bf16.msra.mxu0 %v338
    %405 = vmatprep.subr.bf16.mxu0 0
    %406 = vmatpush1.bf16.msra.mxu0 %v339
    %407 = vmatprep.subr.bf16.mxu0 0
    %408 = vmatpush1.bf16.msra.mxu0 %v340
    %409 = vmatprep.subr.bf16.mxu0 0
    %410 = vmatpush1.bf16.msra.mxu0 %v341
    %411 = vmatprep.subr.bf16.mxu0 0
    %412 = vmatpush1.bf16.msra.mxu0 %v342
    %413 = vmatprep.subr.bf16.mxu0 0
    %414 = vmatpush1.bf16.msra.mxu0 %v343
    %415 = vmatprep.subr.bf16.mxu0 0
    %416 = vmatpush1.bf16.msra.mxu0 %v344
    %417 = vmatprep.subr.bf16.mxu0 0
    %418 = vmatpush1.bf16.msra.mxu0 %v345
    %419 = vmatprep.subr.bf16.mxu0 0
    %420 = vmatpush1.bf16.msra.mxu0 %v346
    %421 = vmatprep.subr.bf16.mxu0 0
    %422 = vmatpush1.bf16.msra.mxu0 %v347
    %423 = vmatprep.subr.bf16.mxu0 0
    %424 = vmatpush1.bf16.msra.mxu0 %v348
    %425 = vmatprep.subr.bf16.mxu0 0
    %426 = vmatpush1.bf16.msra.mxu0 %v349
    %427 = vmatprep.subr.bf16.mxu0 0
    %428 = vmatpush1.bf16.msra.mxu0 %v350
    %429 = vmatprep.subr.bf16.mxu0 0
    %430 = vmatpush1.bf16.msra.mxu0 %v351
    %431 = vmatprep.subr.bf16.mxu0 0
    %432 = vmatpush1.bf16.msra.mxu0 %v352
    %433 = vmatprep.mubr.bf16.mxu0 %v178
    %434 = vmatmul.mubr.bf16.gmra.mrb[0].mxu0 %v177
    %v435 = vpop.f32.mrb[0].mxu0
    %v436 = vadd.f32 0.0, %v435
    %v437 = vpop.f32.mrb[0].mxu0
    %v438 = vpop.f32.mrb[0].mxu0
    %v439 = vadd.f32 0.0, %v438
    %v440 = vpop.f32.mrb[0].mxu0
    %441 = vmatprep.mubr.bf16.mxu0 %v182
    %442 = vmatmul.mubr.bf16.gmra.mrb[0].mxu0 %v181
    %v443 = vpop.f32.mrb[0].mxu0
    %v444 = vadd.f32 0.0, %v443
    %v445 = vpop.f32.mrb[0].mxu0
    %v446 = vpop.f32.mrb[0].mxu0
    %v447 = vadd.f32 0.0, %v446
    %v448 = vpop.f32.mrb[0].mxu0
    %449 = vmatprep.mubr.bf16.mxu0 %v186
    %450 = vmatmul.mubr.bf16.gmra.mrb[0].mxu0 %v185
    %v451 = vpop.f32.mrb[0].mxu0
    %v452 = vadd.f32 0.0, %v451
    %v453 = vpop.f32.mrb[0].mxu0
    %v454 = vpop.f32.mrb[0].mxu0
    %v455 = vadd.f32 0.0, %v454
    %v456 = vpop.f32.mrb[0].mxu0
    %457 = vmatprep.mubr.bf16.mxu0 %v190
    %458 = vmatmul.mubr.bf16.gmra.mrb[0].mxu0 %v189
    %v459 = vpop.f32.mrb[0].mxu0
    %v460 = vadd.f32 0.0, %v459
    %v461 = vpop.f32.mrb[0].mxu0
    %v462 = vpop.f32.mrb[0].mxu0
    %v463 = vadd.f32 0.0, %v462
    %v464 = vpop.f32.mrb[0].mxu0
    %465 = vdwg.mxu0
    %466 = vmatprep.subr.bf16.mxu0 0
    %467 = vmatpush1.bf16.msra.mxu0 %v353
    %468 = vmatprep.subr.bf16.mxu0 0
    %469 = vmatpush1.bf16.msra.mxu0 %v354
    %470 = vmatprep.subr.bf16.mxu0 0
    %471 = vmatpush1.bf16.msra.mxu0 %v355
    %472 = vmatprep.subr.bf16.mxu0 0
    %473 = vmatpush1.bf16.msra.mxu0 %v356
    %474 = vmatprep.subr.bf16.mxu0 0
    %475 = vmatpush1.bf16.msra.mxu0 %v357
    %476 = vmatprep.subr.bf16.mxu0 0
    %477 = vmatpush1.bf16.msra.mxu0 %v358
    %478 = vmatprep.subr.bf16.mxu0 0
    %479 = vmatpush1.bf16.msra.mxu0 %v359
    %480 = vmatprep.subr.bf16.mxu0 0
    %481 = vmatpush1.bf16.msra.mxu0 %v360
    %482 = vmatprep.subr.bf16.mxu0 0
    %483 = vmatpush1.bf16.msra.mxu0 %v361
    %484 = vmatprep.subr.bf16.mxu0 0
    %485 = vmatpush1.bf16.msra.mxu0 %v362
    %486 = vmatprep.subr.bf16.mxu0 0
    %487 = vmatpush1.bf16.msra.mxu0 %v363
    %488 = vmatprep.subr.bf16.mxu0 0
    %489 = vmatpush1.bf16.msra.mxu0 %v364
    %490 = vmatprep.subr.bf16.mxu0 0
    %491 = vmatpush1.bf16.msra.mxu0 %v365
    %492 = vmatprep.subr.bf16.mxu0 0
    %493 = vmatpush1.bf16.msra.mxu0 %v366
    %494 = vmatprep.subr.bf16.mxu0 0
    %495 = vmatpush1.bf16.msra.mxu0 %v367
    %496 = vmatprep.subr.bf16.mxu0 0
    %497 = vmatpush1.bf16.msra.mxu0 %v368
    %498 = vmatprep.mubr.bf16.mxu0 %v180
    %499 = vmatmul.mubr.bf16.gmra.mrb[0].mxu0 %v179
    %v500 = vpop.f32.mrb[0].mxu0
    %v501 = vadd.f32 %v436, %v500
    %v502 = vpop.f32.mrb[0].mxu0
    %v503 = vpop.f32.mrb[0].mxu0
    %v504 = vadd.f32 %v439, %v503
    %v505 = vpop.f32.mrb[0].mxu0
    %506 = vmatprep.mubr.bf16.mxu0 %v184
    %507 = vmatmul.mubr.bf16.gmra.mrb[0].mxu0 %v183
    %v508 = vpop.f32.mrb[0].mxu0
    %v509 = vadd.f32 %v444, %v508
    %v510 = vpop.f32.mrb[0].mxu0
    %v511 = vpop.f32.mrb[0].mxu0
    %v512 = vadd.f32 %v447, %v511
    %v513 = vpop.f32.mrb[0].mxu0
    %514 = vmatprep.mubr.bf16.mxu0 %v188
    %515 = vmatmul.mubr.bf16.gmra.mrb[0].mxu0 %v187
    %v516 = vpop.f32.mrb[0].mxu0
    %v517 = vadd.f32 %v452, %v516
    %v518 = vpop.f32.mrb[0].mxu0
    %v519 = vpop.f32.mrb[0].mxu0
    %v520 = vadd.f32 %v455, %v519
    %v521 = vpop.f32.mrb[0].mxu0
    %522 = vmatprep.mubr.bf16.mxu0 %v192
    %523 = vmatmul.mubr.bf16.gmra.mrb[0].mxu0 %v191
    %v524 = vpop.f32.mrb[0].mxu0
    %v525 = vadd.f32 %v460, %v524
    %v526 = vpop.f32.mrb[0].mxu0
    %v527 = vpop.f32.mrb[0].mxu0
    %v528 = vadd.f32 %v463, %v527
    %v529 = vpop.f32.mrb[0].mxu0
    %530 = vdwg.mxu0
    %v531 = vadd.f32 %v41, %v501
    %v532 = vadd.f32 %v42, %v504
    %v533 = vadd.f32 %v43, %v509
    %v534 = vadd.f32 %v44, %v512
    %v535 = vadd.f32 %v45, %v517
    %v536 = vadd.f32 %v46, %v520
    %v537 = vadd.f32 %v47, %v525
    %v538 = vadd.f32 %v48, %v528
    %539 = vst [vmem:[#allocation2] sm:$0xff] %v531
    %540 = vst [vmem:[#allocation2 + $0x8] sm:$0xff] %v532
    %541 = vst [vmem:[#allocation2 + $0x10] sm:$0xff] %v533
    %542 = vst [vmem:[#allocation2 + $0x18] sm:$0xff] %v534
    %543 = vst [vmem:[#allocation2 + $0x20] sm:$0xff] %v535
    %544 = vst [vmem:[#allocation2 + $0x28] sm:$0xff] %v536
    %545 = vst [vmem:[#allocation2 + $0x30] sm:$0xff] %v537
    %546 = vst [vmem:[#allocation2 + $0x38] sm:$0xff] %v538
    // Predicated region
    $region22: #{decoder_forward.6} parent=1 // pred_check
      %p547 = pneg %p29
    $region23: #{decoder_forward.6} parent=1 // pred_check_branch
      %549 = sbr.rel (%p547) target = $region25
    $region24: #{decoder_forward.6} parent=1 // pred_region
      %v550 = vld [vmem:[#allocation2] sm:$0xff]
      %v551 = vld [vmem:[#allocation2 + $0x8] sm:$0xff]
      %v552 = vld [vmem:[#allocation2 + $0x10] sm:$0xff]
      %v553 = vld [vmem:[#allocation2 + $0x18] sm:$0xff]
      %v554 = vld [vmem:[#allocation2 + $0x20] sm:$0xff]
      %v555 = vld [vmem:[#allocation2 + $0x28] sm:$0xff]
      %v556 = vld [vmem:[#allocation2 + $0x30] sm:$0xff]
      %v557 = vld [vmem:[#allocation2 + $0x38] sm:$0xff]
      %v558 = vld [vmem:[%s2] sm:$0x1]
      %v560 = vlaneseq
      %v561 = vshrl.u32 %v560, 7
      %v562 = vsub.s32 0, %v561
      %v563 = vrot.slane %v558, %v562
      %v565 = vadd.f32 %v550, %v563
      %v566 = vadd.f32 %v551, %v563
      %v567 = vadd.f32 %v552, %v563
      %v568 = vadd.f32 %v553, %v563
      %v569 = vadd.f32 %v554, %v563
      %v570 = vadd.f32 %v555, %v563
      %v571 = vadd.f32 %v556, %v563
      %v572 = vadd.f32 %v557, %v563
      %v573 = vmax.f32 %v565, 0.0
      %v574 = vmax.f32 %v566, 0.0
      %v575 = vmax.f32 %v567, 0.0
      %v576 = vmax.f32 %v568, 0.0
      %v577 = vmax.f32 %v569, 0.0
      %v578 = vmax.f32 %v570, 0.0
      %v579 = vmax.f32 %v571, 0.0
      %v580 = vmax.f32 %v572, 0.0
      %v581 = vpack.c.bf16 %v574, %v573
      %v582 = vpack.c.bf16 %v576, %v575
      %v583 = vpack.c.bf16 %v578, %v577
      %v584 = vpack.c.bf16 %v580, %v579
      %v589 = vunpack.c.l.b16 %v581
      %v590 = vunpack.c.h.b16 %v581
      %v591 = vunpack.c.l.b16 %v582
      %v592 = vunpack.c.h.b16 %v582
      %v593 = vunpack.c.l.b16 %v583
      %v594 = vunpack.c.h.b16 %v583
      %v595 = vunpack.c.l.b16 %v584
      %v596 = vunpack.c.h.b16 %v584
      %v597 = vpack.c.b16 %v589, %v589
      %v598 = vpack.c.b16 %v590, %v590
      %v599 = vpack.c.b16 %v591, %v591
      %v600 = vpack.c.b16 %v592, %v592
      %v601 = vpack.c.b16 %v593, %v593
      %v602 = vpack.c.b16 %v594, %v594
      %v603 = vpack.c.b16 %v595, %v595
      %v604 = vpack.c.b16 %v596, %v596
      %613 = vst [vmem:[%s3] sm:$0xf] %v597
      %614 = vst [vmem:[%s3 + $0x4] sm:$0xf] %v598
      %615 = vst [vmem:[%s3 + $0x8] sm:$0xf] %v599
      %616 = vst [vmem:[%s3 + $0xc] sm:$0xf] %v600
      %617 = vst [vmem:[%s3 + $0x10] sm:$0xf] %v601
      %618 = vst [vmem:[%s3 + $0x14] sm:$0xf] %v602
      %619 = vst [vmem:[%s3 + $0x18] sm:$0xf] %v603
      %620 = vst [vmem:[%s3 + $0x1c] sm:$0xf] %v604
    $region25: #{decoder_forward.6} parent=1 // pred_fallthru
      _
    // Predicated region
    $region26: #{decoder_forward.6} parent=1 // pred_check
      _
    $region27: #{decoder_forward.6} parent=1 // pred_check_branch
      %622 = sbr.rel (0) target = $region29
    $region28: #{decoder_forward.6} parent=1 // pred_region
      _
    $region29: #{decoder_forward.6} parent=1 // pred_fallthru
      _
    // Predicated region
    $region30: #{decoder_forward.6} parent=1 // pred_check
      _
    $region31: #{decoder_forward.6} parent=1 // pred_check_branch
      %624 = sbr.rel (0) target = $region33
    $region32: #{decoder_forward.6} parent=1 // pred_region
      _
    $region33: #{decoder_forward.6} parent=1 // pred_fallthru
      _
    %625 = vsyncpa [#allocation4], 1

// kernel: tile.34
$region0: #{tile.34}
  #allocation0 [shape = 's32[1]{0}', space=sflag, size = 0x4, scoped, tag = 'scoped memory for tile.34']
  %s0 = inlined_call_operand.vmem [shape: f32[3], index: 0, kind: input, shape index: {}]
  %s1 = inlined_call_operand.vmem [shape: f32[4,3], index: 1, kind: output, shape index: {}]
  // Predicated region
  $region2: #{tile.34} parent=0 // pred_check
    _
  $region3: #{tile.34} parent=0 // pred_check_branch
    %3 = sbr.rel (0) target = $region5
  $region4: #{tile.34} parent=0 // pred_region
    _
  $region5: #{tile.34} parent=0 // pred_fallthru
    _
  %v4 = vld [vmem:[%s0] ss:$0 sm:$0xff]
  %5 = vst [vmem:[%s1] sm:$0xf] %v4

// kernel: tile.35
$region0: #{tile.35}
  %s0 = inlined_call_operand.vmem [shape: f32[4,3], index: 0, kind: input, shape index: {}]
  %s1 = inlined_call_operand.vmem [shape: f32[12], index: 1, kind: output, shape index: {}]
  $region1: #{tile.35} parent=0
    #allocation0 [shape = 'u8[4096]{0}', space=vmem, size = 0x1000, scoped, tag = 'scoped mem for output reshape']
    #allocation1 [shape = 'u8[4096]{0}', space=vmem, size = 0x1000, scoped, tag = 'scoped mem for input reshape']
    %s3 = sshllo.u32 0, 4
    %v4 = vld [vmem:[%s0] sm:%s3]
    %5 = vst [vmem:[#allocation1] sm:%s3] %v4
    %v6 = vld [vmem:[#allocation1] sm:$0x1]
    %vm7 = vcmask 23552
    %8 = vst.msk [vmem:[#allocation0] sm:$0x1] %vm7, %v6
    %s9 = scalar_lea.vmem [#allocation1], 3
    %v10 = vld [vmem:[%s9] sm:$0x1]
    %11 = vrot.lane.b32.xlu0 %v10, 9
    %v12 = vpop.permute.xlu0 %11
    %vm13 = vcmask 97352
    %14 = vst.msk [vmem:[#allocation0] sm:$0x1] %vm13, %v12
    %s15 = scalar_lea.vmem [#allocation1], 2
    %v16 = vld [vmem:[%s15] sm:$0x1]
    %17 = vrot.lane.b32.xlu0 %v16, 6
    %v18 = vpop.permute.xlu0 %17
    %vm19 = vcmask 72752
    %20 = vst.msk [vmem:[#allocation0] sm:$0x1] %vm19, %v18
    %s21 = scalar_lea.vmem [#allocation1], 1
    %v22 = vld [vmem:[%s21] sm:$0x1]
    %23 = vrot.lane.b32.xlu0 %v22, 3
    %v24 = vpop.permute.xlu0 %23
    %vm25 = vcmask 48152
    %26 = vst.msk [vmem:[#allocation0] sm:$0x1] %vm25, %v24
    %s28 = sshllo.u32 0, 1
    %v30 = vld [vmem:[#allocation0] sm:%s28]
    %s31 = sshllo.u32 0, 1
    %32 = vst [vmem:[%s1] sm:%s31] %v30

// kernel: decoder_forward.7
$region0: #{decoder_forward.7}
  #allocation0 [shape = 'u32[]', space=smem, size = 0x4, offset = 0x4, fixed_abs, tag = 'smem constant byte address 0x4 - core index']
  #allocation1 [shape = 'u32[144,128]{1,0:T(1,128)}', space=vmem, size = 0x12000, scoped, tag = 'internal scratch']
  #allocation2 [shape = 'f32[256,128]{1,0:T(8,128)}', space=vmem, size = 0x20000, scoped, tag = 'scratch operand']
  %s0 = inlined_call_operand.vmem [shape: bf16[512,640], index: 0, kind: input, shape index: {}]
  %s1 = inlined_call_operand.vmem [shape: bf16[640,128], index: 1, kind: input, shape index: {}]
  %s2 = inlined_call_operand.vmem [shape: f32[1,128], index: 2, kind: input, shape index: {}]
  %s3 = inlined_call_operand.vmem [shape: f32[512,128], index: 3, kind: output, shape index: {}]
  %s4 = sld [smem:[#allocation0]]
  $region53: #{decoder_forward.7} parent=0
    _
  %s6 = ssub.s32 1, %s4
  %s7 = scalar_select 0, %s6, %s4
  loop: start=0, step=1, limit=4
  $region2: #{decoder_forward.7} parent=0 // loop_pre_header
    _
  $region3: #{decoder_forward.7} parent=0 // loop_header
    %s9 = sphi 0, %s13
    %p10 = scmp.ge.s32.totalorder %s9, 4
    %s16 = sphi 0, %s35
    %s17 = sphi 0, %s31
    %s18 = sphi 0, %s27
    %s19 = sphi 0, %s16
    %s20 = sphi 0, %s17
    %s21 = sphi 0, %s18
    %s22 = sphi 0, %s19
    %s23 = sphi 0, %s20
    %s24 = sphi 0, %s21
    %s40 = sphi 0, %s42
    %s43 = sphi 0, %s40
    %s44 = sphi 0, %s43
    %s60 = sphi 0, %s44
    %s68 = sphi 0, %s70
    %s71 = sphi 0, %s68
    %s72 = sphi 0, %s71
    %s88 = sphi 0, %s72
    %s94 = sphi 0, %s96
    %s97 = sphi 0, %s94
    %s98 = sphi 0, %s97
    %s114 = sphi 0, %s98
    %s122 = sphi 0, %s124
    %s125 = sphi 0, %s122
    %s126 = sphi 0, %s125
    %s142 = sphi 0, %s126
  $region4: #{decoder_forward.7} parent=0 // loop_header_branch
    %12 = sbr.rel (%p10) target = $region8
  $region5: #{decoder_forward.7} parent=0 // loop_body
    %s14 = ssub.s32 %s9, 1
    %s15 = ssub.s32 %s9, 2
    %s25 = sadd.s32 1, %s18
    %p26 = scmp.ge.s32.totalorder %s25, 1
    %s27 = scalar_select %p26, 0, %s25
    %s28 = sadd.s32 1, %s17
    %s29 = scalar_select %p26, %s28, %s17
    %p30 = scmp.ge.s32.totalorder %s29, 1
    %s31 = scalar_select %p30, 0, %s29
    %s32 = sadd.s32 1, %s16
    %s33 = scalar_select %p30, %s32, %s16
    %p34 = scmp.ge.s32.totalorder %s33, 2
    %s35 = scalar_select %p34, 0, %s33
    %s36 = ssub.s32 %s16, %s35
    %s37 = ssub.s32 %s18, %s27
    %s38 = sor.u32 %s36, %s37
    %p39 = scmp.eq.s32.totalorder %s38, 0
    %s41 = sadd.s32 %s40, 1
    %s42 = scalar_select %p39, %s40, %s41
    %p45 = pneg %p39
    %p46 = scmp.eq.s32.totalorder %s9, 1
    %p47 = por %p45, %p46
    %p48 = scmp.ne.s32.totalorder %s40, %s43
    %p49 = scmp.eq.s32.totalorder %s9, 0
    %p50 = por %p48, %p49
    %p51 = scmp.ne.s32.totalorder %s40, %s43
    %p52 = scmp.eq.s32.totalorder %s14, 1
    %p53 = por %p51, %p52
    %p54 = scmp.ne.s32.totalorder %s43, %s44
    %p55 = scmp.eq.s32.totalorder %s14, 0
    %p56 = por %p54, %p55
    %p57 = scmp.ne.s32.totalorder %s43, %s44
    %p58 = scmp.eq.s32.totalorder %s15, 1
    %p59 = por %p57, %p58
    %p61 = scmp.ne.s32.totalorder %s44, %s60
    %p62 = scmp.eq.s32.totalorder %s15, 0
    %p63 = por %p61, %p62
    %s64 = ssub.s32 %s18, %s27
    %s65 = ssub.s32 %s17, %s31
    %s66 = sor.u32 %s64, %s65
    %p67 = scmp.eq.s32.totalorder %s66, 0
    %s69 = sadd.s32 %s68, 1
    %s70 = scalar_select %p67, %s68, %s69
    %p73 = pneg %p67
    %p74 = scmp.eq.s32.totalorder %s9, 1
    %p75 = por %p73, %p74
    %p76 = scmp.ne.s32.totalorder %s68, %s71
    %p77 = scmp.eq.s32.totalorder %s9, 0
    %p78 = por %p76, %p77
    %p79 = scmp.ne.s32.totalorder %s68, %s71
    %p80 = scmp.eq.s32.totalorder %s14, 1
    %p81 = por %p79, %p80
    %p82 = scmp.ne.s32.totalorder %s71, %s72
    %p83 = scmp.eq.s32.totalorder %s14, 0
    %p84 = por %p82, %p83
    %p85 = scmp.ne.s32.totalorder %s71, %s72
    %p86 = scmp.eq.s32.totalorder %s15, 1
    %p87 = por %p85, %p86
    %p89 = scmp.ne.s32.totalorder %s72, %s88
    %p90 = scmp.eq.s32.totalorder %s15, 0
    %p91 = por %p89, %p90
    %s92 = ssub.s32 %s17, %s31
    %p93 = scmp.eq.s32.totalorder %s92, 0
    %s95 = sadd.s32 %s94, 1
    %s96 = scalar_select %p93, %s94, %s95
    %p99 = pneg %p93
    %p100 = scmp.eq.s32.totalorder %s9, 1
    %p101 = por %p99, %p100
    %p102 = scmp.ne.s32.totalorder %s94, %s97
    %p103 = scmp.eq.s32.totalorder %s9, 0
    %p104 = por %p102, %p103
    %p105 = scmp.ne.s32.totalorder %s94, %s97
    %p106 = scmp.eq.s32.totalorder %s14, 1
    %p107 = por %p105, %p106
    %p108 = scmp.ne.s32.totalorder %s97, %s98
    %p109 = scmp.eq.s32.totalorder %s14, 0
    %p110 = por %p108, %p109
    %p111 = scmp.ne.s32.totalorder %s97, %s98
    %p112 = scmp.eq.s32.totalorder %s15, 1
    %p113 = por %p111, %p112
    %p115 = scmp.ne.s32.totalorder %s98, %s114
    %p116 = scmp.eq.s32.totalorder %s15, 0
    %p117 = por %p115, %p116
    %s118 = ssub.s32 %s16, %s35
    %s119 = ssub.s32 %s17, %s31
    %s120 = sor.u32 %s118, %s119
    %p121 = scmp.eq.s32.totalorder %s120, 0
    %s123 = sadd.s32 %s122, 1
    %s124 = scalar_select %p121, %s122, %s123
    %p127 = pneg %p121
    %p128 = scmp.eq.s32.totalorder %s9, 1
    %p129 = por %p127, %p128
    %p130 = scmp.ne.s32.totalorder %s122, %s125
    %p131 = scmp.eq.s32.totalorder %s9, 0
    %p132 = por %p130, %p131
    %p133 = scmp.ne.s32.totalorder %s122, %s125
    %p134 = scmp.eq.s32.totalorder %s14, 1
    %p135 = por %p133, %p134
    %p136 = scmp.ne.s32.totalorder %s125, %s126
    %p137 = scmp.eq.s32.totalorder %s14, 0
    %p138 = por %p136, %p137
    %p139 = scmp.ne.s32.totalorder %s125, %s126
    %p140 = scmp.eq.s32.totalorder %s15, 1
    %p141 = por %p139, %p140
    %p143 = scmp.ne.s32.totalorder %s126, %s142
    %p144 = scmp.eq.s32.totalorder %s15, 0
    %p145 = por %p143, %p144
    %p146 = scmp.le.s32.totalorder 1, %s9
    %p147 = scmp.lt.s32.totalorder %s9, 3
    %p148 = pnand %p146, %p147
    %p149 = pneg %p148
    // Predicated region
    $region9: #{decoder_forward.7} parent=5 // pred_check
      _
    $region10: #{decoder_forward.7} parent=5 // pred_check_branch
      %151 = sbr.rel (%p148) target = $region12
    $region11: #{decoder_forward.7} parent=5 // pred_region
      %s152 = ssub.s32 %s9, 1
      // Predicated region
      $region13: #{decoder_forward.7} parent=11 // pred_check
        %p153 = pneg %p84
      $region14: #{decoder_forward.7} parent=11 // pred_check_branch
        %155 = sbr.rel (%p153) target = $region16
      $region15: #{decoder_forward.7} parent=11 // pred_region
        %s156 = smul.u32 80, %s21
        %p157 = scmp.lt.s32.totalorder %s156, 79
        %s158 = scalar_select %p157, %s156, 79
        %p159 = scmp.lt.s32.totalorder %s20, 0
        %s160 = scalar_select %p159, %s20, 0
        %s161 = sadd.s32 %s160, %s158
        %s162 = smul.addr %s161, 4
        %s163 = scalar_lea.vmem %s1, %s162
        %s164 = smul.u32 80, %s21
      $region16: #{decoder_forward.7} parent=11 // pred_fallthru
        _
      // Predicated region
      $region17: #{decoder_forward.7} parent=11 // pred_check
        %p165 = pneg %p110
      $region18: #{decoder_forward.7} parent=11 // pred_check_branch
        %167 = sbr.rel (%p165) target = $region20
      $region19: #{decoder_forward.7} parent=11 // pred_region
        %p168 = scmp.lt.s32.totalorder %s20, 0
        %s169 = scalar_select %p168, %s20, 0
        %s170 = scalar_lea.vmem %s2, %s169
      $region20: #{decoder_forward.7} parent=11 // pred_fallthru
        _
    $region12: #{decoder_forward.7} parent=5 // pred_fallthru
      _
    %p171 = scmp.lt.s32.totalorder %s9, 2
    // Predicated region
    $region21: #{decoder_forward.7} parent=5 // pred_check
      %p172 = pneg %p171
    $region22: #{decoder_forward.7} parent=5 // pred_check_branch
      %174 = sbr.rel (%p172) target = $region24
    $region23: #{decoder_forward.7} parent=5 // pred_region
      // Predicated region
      $region25: #{decoder_forward.7} parent=23 // pred_check
        %p175 = pneg %p50
      $region26: #{decoder_forward.7} parent=23 // pred_check_branch
        %177 = sbr.rel (%p175) target = $region28
      $region27: #{decoder_forward.7} parent=23 // pred_region
        %s178 = smul.u32 32, %s16
        %s179 = smul.u32 5, %s18
        %p180 = scmp.lt.s32.totalorder %s178, 63
        %s181 = scalar_select %p180, %s178, 63
        %p182 = scmp.lt.s32.totalorder %s179, 4
        %s183 = scalar_select %p182, %s179, 4
        %s184 = smul.addr %s181, 5
        %s185 = sadd.s32 %s183, %s184
        %s186 = smul.addr %s185, 4
        %s187 = scalar_lea.vmem %s0, %s186
        %s188 = smul.u32 32, %s16
        %s189 = smul.u32 5, %s18
      $region28: #{decoder_forward.7} parent=23 // pred_fallthru
        _
    $region24: #{decoder_forward.7} parent=5 // pred_fallthru
      _
    %p190 = scmp.le.s32.totalorder 1, %s9
    %p191 = scmp.lt.s32.totalorder %s9, 3
    %p192 = pnand %p190, %p191
    %p193 = pneg %p192
    // Predicated region
    $region29: #{decoder_forward.7} parent=5 // pred_check
      _
    $region30: #{decoder_forward.7} parent=5 // pred_check_branch
      %195 = sbr.rel (%p192) target = $region32
    $region31: #{decoder_forward.7} parent=5 // pred_region
      %s196 = ssub.s32 %s9, 1
      %s197 = smul.u32 32, %s19
      %s198 = smul.u32 5, %s21
      %p199 = scmp.lt.s32.totalorder %s197, 63
      %s200 = scalar_select %p199, %s197, 63
      %p201 = scmp.lt.s32.totalorder %s198, 4
      %s202 = scalar_select %p201, %s198, 4
      %s203 = smul.addr %s200, 5
      %s204 = sadd.s32 %s202, %s203
      %s205 = smul.addr %s204, 4
      %s206 = scalar_lea.vmem %s0, %s205
      %p207 = pneg %p56
      %p208 = pneg %p53
      %s209 = smul.u32 80, %s21
      %p210 = scmp.lt.s32.totalorder %s209, 79
      %s211 = scalar_select %p210, %s209, 79
      %p212 = scmp.lt.s32.totalorder %s20, 0
      %s213 = scalar_select %p212, %s20, 0
      %s214 = sadd.s32 %s213, %s211
      %s215 = smul.addr %s214, 4
      %s216 = scalar_lea.vmem %s1, %s215
      %p217 = pneg %p84
      %p218 = pneg %p81
      %p219 = scmp.lt.s32.totalorder %s20, 0
      %s220 = scalar_select %p219, %s20, 0
      %s221 = scalar_lea.vmem %s2, %s220
      %p222 = pneg %p110
      %p223 = pneg %p107
      %p224 = pneg %p138
      %p225 = pneg %p135
      %s226 = smul.u32 32, %s19
      %p227 = scmp.lt.s32.totalorder %s226, 63
      %s228 = scalar_select %p227, %s226, 63
      %p229 = scmp.lt.s32.totalorder %s20, 0
      %s230 = scalar_select %p229, %s20, 0
      %s231 = sadd.s32 %s230, %s228
      %s232 = smul.addr %s231, 8
      %s233 = scalar_lea.vmem %s3, %s232
      %s234 = smul.u32 32, %s19
      %s235 = smul.u32 5, %s21
      %p236 = scmp.lt.s32.totalorder %s234, 63
      %s237 = scalar_select %p236, %s234, 63
      %p238 = scmp.lt.s32.totalorder %s235, 4
      %s239 = scalar_select %p238, %s235, 4
      %s240 = smul.addr %s237, 5
      %s241 = sadd.s32 %s239, %s240
      %s242 = smul.addr %s241, 4
      %s243 = scalar_lea.vmem %s0, %s242
      %s244 = smul.u32 32, %s19
      %s245 = smul.u32 5, %s21
      %s246 = smul.u32 80, %s21
      %p247 = scmp.lt.s32.totalorder %s246, 79
      %s248 = scalar_select %p247, %s246, 79
      %p249 = scmp.lt.s32.totalorder %s20, 0
      %s250 = scalar_select %p249, %s20, 0
      %s251 = sadd.s32 %s250, %s248
      %s252 = smul.addr %s251, 4
      %s253 = scalar_lea.vmem %s1, %s252
      %s254 = smul.u32 80, %s21
      %p255 = scmp.lt.s32.totalorder %s20, 0
      %s256 = scalar_select %p255, %s20, 0
      %s257 = scalar_lea.vmem %s2, %s256
      %s258 = smul.u32 32, %s19
      %p259 = scmp.lt.s32.totalorder %s258, 63
      %s260 = scalar_select %p259, %s258, 63
      %p261 = scmp.lt.s32.totalorder %s20, 0
      %s262 = scalar_select %p261, %s20, 0
      %s263 = sadd.s32 %s262, %s260
      %s264 = smul.addr %s263, 8
      %s265 = scalar_lea.vmem %s3, %s264
      %s266 = smul.u32 32, %s19
      %p268 = scmp.eq.s32.totalorder %s21, 0
      // Predicated region
      $region33: #{decoder_forward.7} parent=31 // pred_check
        %p269 = pneg %p268
      $region34: #{decoder_forward.7} parent=31 // pred_check_branch
        %271 = sbr.rel (%p269) target = $region36
      $region35: #{decoder_forward.7} parent=31 // pred_region
        %272 = vst [vmem:[#allocation2] sm:$0xff] 0.0
        %273 = vst [vmem:[#allocation2 + $0x8] sm:$0xff] 0.0
        %274 = vst [vmem:[#allocation2 + $0x10] sm:$0xff] 0.0
        %275 = vst [vmem:[#allocation2 + $0x18] sm:$0xff] 0.0
        %276 = vst [vmem:[#allocation2 + $0x20] sm:$0xff] 0.0
        %277 = vst [vmem:[#allocation2 + $0x28] sm:$0xff] 0.0
        %278 = vst [vmem:[#allocation2 + $0x30] sm:$0xff] 0.0
        %279 = vst [vmem:[#allocation2 + $0x38] sm:$0xff] 0.0
        %280 = vst [vmem:[#allocation2 + $0x40] sm:$0xff] 0.0
        %281 = vst [vmem:[#allocation2 + $0x48] sm:$0xff] 0.0
        %282 = vst [vmem:[#allocation2 + $0x50] sm:$0xff] 0.0
        %283 = vst [vmem:[#allocation2 + $0x58] sm:$0xff] 0.0
        %284 = vst [vmem:[#allocation2 + $0x60] sm:$0xff] 0.0
        %285 = vst [vmem:[#allocation2 + $0x68] sm:$0xff] 0.0
        %286 = vst [vmem:[#allocation2 + $0x70] sm:$0xff] 0.0
        %287 = vst [vmem:[#allocation2 + $0x78] sm:$0xff] 0.0
        %288 = vst [vmem:[#allocation2 + $0x80] sm:$0xff] 0.0
        %289 = vst [vmem:[#allocation2 + $0x88] sm:$0xff] 0.0
        %290 = vst [vmem:[#allocation2 + $0x90] sm:$0xff] 0.0
        %291 = vst [vmem:[#allocation2 + $0x98] sm:$0xff] 0.0
        %292 = vst [vmem:[#allocation2 + $0xa0] sm:$0xff] 0.0
        %293 = vst [vmem:[#allocation2 + $0xa8] sm:$0xff] 0.0
        %294 = vst [vmem:[#allocation2 + $0xb0] sm:$0xff] 0.0
        %295 = vst [vmem:[#allocation2 + $0xb8] sm:$0xff] 0.0
        %296 = vst [vmem:[#allocation2 + $0xc0] sm:$0xff] 0.0
        %297 = vst [vmem:[#allocation2 + $0xc8] sm:$0xff] 0.0
        %298 = vst [vmem:[#allocation2 + $0xd0] sm:$0xff] 0.0
        %299 = vst [vmem:[#allocation2 + $0xd8] sm:$0xff] 0.0
        %300 = vst [vmem:[#allocation2 + $0xe0] sm:$0xff] 0.0
        %301 = vst [vmem:[#allocation2 + $0xe8] sm:$0xff] 0.0
        %302 = vst [vmem:[#allocation2 + $0xf0] sm:$0xff] 0.0
        %303 = vst [vmem:[#allocation2 + $0xf8] sm:$0xff] 0.0
      $region36: #{decoder_forward.7} parent=31 // pred_fallthru
        _
      %v304 = vld [vmem:[#allocation2] sm:$0xff]
      %v305 = vld [vmem:[#allocation2 + $0x8] sm:$0xff]
      %v306 = vld [vmem:[#allocation2 + $0x10] sm:$0xff]
      %v307 = vld [vmem:[#allocation2 + $0x18] sm:$0xff]
      %v308 = vld [vmem:[#allocation2 + $0x20] sm:$0xff]
      %v309 = vld [vmem:[#allocation2 + $0x28] sm:$0xff]
      %v310 = vld [vmem:[#allocation2 + $0x30] sm:$0xff]
      %v311 = vld [vmem:[#allocation2 + $0x38] sm:$0xff]
      %v312 = vld [vmem:[#allocation2 + $0x40] sm:$0xff]
      %v313 = vld [vmem:[#allocation2 + $0x48] sm:$0xff]
      %v314 = vld [vmem:[#allocation2 + $0x50] sm:$0xff]
      %v315 = vld [vmem:[#allocation2 + $0x58] sm:$0xff]
      %v316 = vld [vmem:[#allocation2 + $0x60] sm:$0xff]
      %v317 = vld [vmem:[#allocation2 + $0x68] sm:$0xff]
      %v318 = vld [vmem:[#allocation2 + $0x70] sm:$0xff]
      %v319 = vld [vmem:[#allocation2 + $0x78] sm:$0xff]
      %v320 = vld [vmem:[#allocation2 + $0x80] sm:$0xff]
      %v321 = vld [vmem:[#allocation2 + $0x88] sm:$0xff]
      %v322 = vld [vmem:[#allocation2 + $0x90] sm:$0xff]
      %v323 = vld [vmem:[#allocation2 + $0x98] sm:$0xff]
      %v324 = vld [vmem:[#allocation2 + $0xa0] sm:$0xff]
      %v325 = vld [vmem:[#allocation2 + $0xa8] sm:$0xff]
      %v326 = vld [vmem:[#allocation2 + $0xb0] sm:$0xff]
      %v327 = vld [vmem:[#allocation2 + $0xb8] sm:$0xff]
      %v328 = vld [vmem:[#allocation2 + $0xc0] sm:$0xff]
      %v329 = vld [vmem:[#allocation2 + $0xc8] sm:$0xff]
      %v330 = vld [vmem:[#allocation2 + $0xd0] sm:$0xff]
      %v331 = vld [vmem:[#allocation2 + $0xd8] sm:$0xff]
      %v332 = vld [vmem:[#allocation2 + $0xe0] sm:$0xff]
      %v333 = vld [vmem:[#allocation2 + $0xe8] sm:$0xff]
      %v334 = vld [vmem:[#allocation2 + $0xf0] sm:$0xff]
      %v335 = vld [vmem:[#allocation2 + $0xf8] sm:$0xff]
      %v336 = vld [vmem:[%s243] sm:$0xff]
      %v337 = vld [vmem:[%s243 + $0x8] sm:$0xff]
      %v338 = vld [vmem:[%s243 + $0x10] sm:$0xf]
      %v339 = vld [vmem:[%s243 + $0x14] sm:$0xff]
      %v340 = vld [vmem:[%s243 + $0x1c] sm:$0xff]
      %v341 = vld [vmem:[%s243 + $0x24] sm:$0xf]
      %v342 = vld [vmem:[%s243 + $0x28] sm:$0xff]
      %v343 = vld [vmem:[%s243 + $0x30] sm:$0xff]
      %v344 = vld [vmem:[%s243 + $0x38] sm:$0xf]
      %v345 = vld [vmem:[%s243 + $0x3c] sm:$0xff]
      %v346 = vld [vmem:[%s243 + $0x44] sm:$0xff]
      %v347 = vld [vmem:[%s243 + $0x4c] sm:$0xf]
      %v348 = vld [vmem:[%s243 + $0x50] sm:$0xff]
      %v349 = vld [vmem:[%s243 + $0x58] sm:$0xff]
      %v350 = vld [vmem:[%s243 + $0x60] sm:$0xf]
      %v351 = vld [vmem:[%s243 + $0x64] sm:$0xff]
      %v352 = vld [vmem:[%s243 + $0x6c] sm:$0xff]
      %v353 = vld [vmem:[%s243 + $0x74] sm:$0xf]
      %v354 = vld [vmem:[%s243 + $0x78] sm:$0xff]
      %v355 = vld [vmem:[%s243 + $0x80] sm:$0xff]
      %v356 = vld [vmem:[%s243 + $0x88] sm:$0xf]
      %v357 = vld [vmem:[%s243 + $0x8c] sm:$0xff]
      %v358 = vld [vmem:[%s243 + $0x94] sm:$0xff]
      %v359 = vld [vmem:[%s243 + $0x9c] sm:$0xf]
      %v360 = vld [vmem:[%s243 + $0xa0] sm:$0xff]
      %v361 = vld [vmem:[%s243 + $0xa8] sm:$0xff]
      %v362 = vld [vmem:[%s243 + $0xb0] sm:$0xf]
      %v363 = vld [vmem:[%s243 + $0xb4] sm:$0xff]
      %v364 = vld [vmem:[%s243 + $0xbc] sm:$0xff]
      %v365 = vld [vmem:[%s243 + $0xc4] sm:$0xf]
      %v366 = vld [vmem:[%s243 + $0xc8] sm:$0xff]
      %v367 = vld [vmem:[%s243 + $0xd0] sm:$0xff]
      %v368 = vld [vmem:[%s243 + $0xd8] sm:$0xf]
      %v369 = vld [vmem:[%s243 + $0xdc] sm:$0xff]
      %v370 = vld [vmem:[%s243 + $0xe4] sm:$0xff]
      %v371 = vld [vmem:[%s243 + $0xec] sm:$0xf]
      %v372 = vld [vmem:[%s243 + $0xf0] sm:$0xff]
      %v373 = vld [vmem:[%s243 + $0xf8] sm:$0xff]
      %v374 = vld [vmem:[%s243 + $0x100] sm:$0xf]
      %v375 = vld [vmem:[%s243 + $0x104] sm:$0xff]
      %v376 = vld [vmem:[%s243 + $0x10c] sm:$0xff]
      %v377 = vld [vmem:[%s243 + $0x114] sm:$0xf]
      %v378 = vld [vmem:[%s243 + $0x118] sm:$0xff]
      %v379 = vld [vmem:[%s243 + $0x120] sm:$0xff]
      %v380 = vld [vmem:[%s243 + $0x128] sm:$0xf]
      %v381 = vld [vmem:[%s243 + $0x12c] sm:$0xff]
      %v382 = vld [vmem:[%s243 + $0x134] sm:$0xff]
      %v383 = vld [vmem:[%s243 + $0x13c] sm:$0xf]
      %v384 = vld [vmem:[%s243 + $0x140] sm:$0xff]
      %v385 = vld [vmem:[%s243 + $0x148] sm:$0xff]
      %v386 = vld [vmem:[%s243 + $0x150] sm:$0xf]
      %v387 = vld [vmem:[%s243 + $0x154] sm:$0xff]
      %v388 = vld [vmem:[%s243 + $0x15c] sm:$0xff]
      %v389 = vld [vmem:[%s243 + $0x164] sm:$0xf]
      %v390 = vld [vmem:[%s243 + $0x168] sm:$0xff]
      %v391 = vld [vmem:[%s243 + $0x170] sm:$0xff]
      %v392 = vld [vmem:[%s243 + $0x178] sm:$0xf]
      %v393 = vld [vmem:[%s243 + $0x17c] sm:$0xff]
      %v394 = vld [vmem:[%s243 + $0x184] sm:$0xff]
      %v395 = vld [vmem:[%s243 + $0x18c] sm:$0xf]
      %v396 = vld [vmem:[%s243 + $0x190] sm:$0xff]
      %v397 = vld [vmem:[%s243 + $0x198] sm:$0xff]
      %v398 = vld [vmem:[%s243 + $0x1a0] sm:$0xf]
      %v399 = vld [vmem:[%s243 + $0x1a4] sm:$0xff]
      %v400 = vld [vmem:[%s243 + $0x1ac] sm:$0xff]
      %v401 = vld [vmem:[%s243 + $0x1b4] sm:$0xf]
      %v402 = vld [vmem:[%s243 + $0x1b8] sm:$0xff]
      %v403 = vld [vmem:[%s243 + $0x1c0] sm:$0xff]
      %v404 = vld [vmem:[%s243 + $0x1c8] sm:$0xf]
      %v405 = vld [vmem:[%s243 + $0x1cc] sm:$0xff]
      %v406 = vld [vmem:[%s243 + $0x1d4] sm:$0xff]
      %v407 = vld [vmem:[%s243 + $0x1dc] sm:$0xf]
      %v408 = vld [vmem:[%s243 + $0x1e0] sm:$0xff]
      %v409 = vld [vmem:[%s243 + $0x1e8] sm:$0xff]
      %v410 = vld [vmem:[%s243 + $0x1f0] sm:$0xf]
      %v411 = vld [vmem:[%s243 + $0x1f4] sm:$0xff]
      %v412 = vld [vmem:[%s243 + $0x1fc] sm:$0xff]
      %v413 = vld [vmem:[%s243 + $0x204] sm:$0xf]
      %v414 = vld [vmem:[%s243 + $0x208] sm:$0xff]
      %v415 = vld [vmem:[%s243 + $0x210] sm:$0xff]
      %v416 = vld [vmem:[%s243 + $0x218] sm:$0xf]
      %v417 = vld [vmem:[%s243 + $0x21c] sm:$0xff]
      %v418 = vld [vmem:[%s243 + $0x224] sm:$0xff]
      %v419 = vld [vmem:[%s243 + $0x22c] sm:$0xf]
      %v420 = vld [vmem:[%s243 + $0x230] sm:$0xff]
      %v421 = vld [vmem:[%s243 + $0x238] sm:$0xff]
      %v422 = vld [vmem:[%s243 + $0x240] sm:$0xf]
      %v423 = vld [vmem:[%s243 + $0x244] sm:$0xff]
      %v424 = vld [vmem:[%s243 + $0x24c] sm:$0xff]
      %v425 = vld [vmem:[%s243 + $0x254] sm:$0xf]
      %v426 = vld [vmem:[%s243 + $0x258] sm:$0xff]
      %v427 = vld [vmem:[%s243 + $0x260] sm:$0xff]
      %v428 = vld [vmem:[%s243 + $0x268] sm:$0xf]
      %v429 = vld [vmem:[%s243 + $0x26c] sm:$0xff]
      %v430 = vld [vmem:[%s243 + $0x274] sm:$0xff]
      %v431 = vld [vmem:[%s243 + $0x27c] sm:$0xf]
      %v432 = vld [vmem:[%s253] sm:$0xf]
      %v433 = vld [vmem:[%s253 + $0x4] sm:$0xf]
      %v434 = vld [vmem:[%s253 + $0x8] sm:$0xf]
      %v435 = vld [vmem:[%s253 + $0xc] sm:$0xf]
      %v436 = vld [vmem:[%s253 + $0x10] sm:$0xf]
      %v437 = vld [vmem:[%s253 + $0x14] sm:$0xf]
      %v438 = vld [vmem:[%s253 + $0x18] sm:$0xf]
      %v439 = vld [vmem:[%s253 + $0x1c] sm:$0xf]
      %v440 = vld [vmem:[%s253 + $0x20] sm:$0xf]
      %v441 = vld [vmem:[%s253 + $0x24] sm:$0xf]
      %v442 = vld [vmem:[%s253 + $0x28] sm:$0xf]
      %v443 = vld [vmem:[%s253 + $0x2c] sm:$0xf]
      %v444 = vld [vmem:[%s253 + $0x30] sm:$0xf]
      %v445 = vld [vmem:[%s253 + $0x34] sm:$0xf]
      %v446 = vld [vmem:[%s253 + $0x38] sm:$0xf]
      %v447 = vld [vmem:[%s253 + $0x3c] sm:$0xf]
      %v448 = vld [vmem:[%s253 + $0x40] sm:$0xf]
      %v449 = vld [vmem:[%s253 + $0x44] sm:$0xf]
      %v450 = vld [vmem:[%s253 + $0x48] sm:$0xf]
      %v451 = vld [vmem:[%s253 + $0x4c] sm:$0xf]
      %v452 = vld [vmem:[%s253 + $0x50] sm:$0xf]
      %v453 = vld [vmem:[%s253 + $0x54] sm:$0xf]
      %v454 = vld [vmem:[%s253 + $0x58] sm:$0xf]
      %v455 = vld [vmem:[%s253 + $0x5c] sm:$0xf]
      %v456 = vld [vmem:[%s253 + $0x60] sm:$0xf]
      %v457 = vld [vmem:[%s253 + $0x64] sm:$0xf]
      %v458 = vld [vmem:[%s253 + $0x68] sm:$0xf]
      %v459 = vld [vmem:[%s253 + $0x6c] sm:$0xf]
      %v460 = vld [vmem:[%s253 + $0x70] sm:$0xf]
      %v461 = vld [vmem:[%s253 + $0x74] sm:$0xf]
      %v462 = vld [vmem:[%s253 + $0x78] sm:$0xf]
      %v463 = vld [vmem:[%s253 + $0x7c] sm:$0xf]
      %v464 = vld [vmem:[%s253 + $0x80] sm:$0xf]
      %v465 = vld [vmem:[%s253 + $0x84] sm:$0xf]
      %v466 = vld [vmem:[%s253 + $0x88] sm:$0xf]
      %v467 = vld [vmem:[%s253 + $0x8c] sm:$0xf]
      %v468 = vld [vmem:[%s253 + $0x90] sm:$0xf]
      %v469 = vld [vmem:[%s253 + $0x94] sm:$0xf]
      %v470 = vld [vmem:[%s253 + $0x98] sm:$0xf]
      %v471 = vld [vmem:[%s253 + $0x9c] sm:$0xf]
      %v472 = vld [vmem:[%s253 + $0xa0] sm:$0xf]
      %v473 = vld [vmem:[%s253 + $0xa4] sm:$0xf]
      %v474 = vld [vmem:[%s253 + $0xa8] sm:$0xf]
      %v475 = vld [vmem:[%s253 + $0xac] sm:$0xf]
      %v476 = vld [vmem:[%s253 + $0xb0] sm:$0xf]
      %v477 = vld [vmem:[%s253 + $0xb4] sm:$0xf]
      %v478 = vld [vmem:[%s253 + $0xb8] sm:$0xf]
      %v479 = vld [vmem:[%s253 + $0xbc] sm:$0xf]
      %v480 = vld [vmem:[%s253 + $0xc0] sm:$0xf]
      %v481 = vld [vmem:[%s253 + $0xc4] sm:$0xf]
      %v482 = vld [vmem:[%s253 + $0xc8] sm:$0xf]
      %v483 = vld [vmem:[%s253 + $0xcc] sm:$0xf]
      %v484 = vld [vmem:[%s253 + $0xd0] sm:$0xf]
      %v485 = vld [vmem:[%s253 + $0xd4] sm:$0xf]
      %v486 = vld [vmem:[%s253 + $0xd8] sm:$0xf]
      %v487 = vld [vmem:[%s253 + $0xdc] sm:$0xf]
      %v488 = vld [vmem:[%s253 + $0xe0] sm:$0xf]
      %v489 = vld [vmem:[%s253 + $0xe4] sm:$0xf]
      %v490 = vld [vmem:[%s253 + $0xe8] sm:$0xf]
      %v491 = vld [vmem:[%s253 + $0xec] sm:$0xf]
      %v492 = vld [vmem:[%s253 + $0xf0] sm:$0xf]
      %v493 = vld [vmem:[%s253 + $0xf4] sm:$0xf]
      %v494 = vld [vmem:[%s253 + $0xf8] sm:$0xf]
      %v495 = vld [vmem:[%s253 + $0xfc] sm:$0xf]
      %v496 = vld [vmem:[%s253 + $0x100] sm:$0xf]
      %v497 = vld [vmem:[%s253 + $0x104] sm:$0xf]
      %v498 = vld [vmem:[%s253 + $0x108] sm:$0xf]
      %v499 = vld [vmem:[%s253 + $0x10c] sm:$0xf]
      %v500 = vld [vmem:[%s253 + $0x110] sm:$0xf]
      %v501 = vld [vmem:[%s253 + $0x114] sm:$0xf]
      %v502 = vld [vmem:[%s253 + $0x118] sm:$0xf]
      %v503 = vld [vmem:[%s253 + $0x11c] sm:$0xf]
      %v504 = vld [vmem:[%s253 + $0x120] sm:$0xf]
      %v505 = vld [vmem:[%s253 + $0x124] sm:$0xf]
      %v506 = vld [vmem:[%s253 + $0x128] sm:$0xf]
      %v507 = vld [vmem:[%s253 + $0x12c] sm:$0xf]
      %v508 = vld [vmem:[%s253 + $0x130] sm:$0xf]
      %v509 = vld [vmem:[%s253 + $0x134] sm:$0xf]
      %v510 = vld [vmem:[%s253 + $0x138] sm:$0xf]
      %v511 = vld [vmem:[%s253 + $0x13c] sm:$0xf]
      %v608 = vunpack.c.l.b16 %v336
      %v609 = vunpack.c.h.b16 %v336
      %v610 = vunpack.c.l.b16 %v337
      %v611 = vunpack.c.h.b16 %v337
      %v612 = vunpack.c.l.b16 %v338
      %v613 = vunpack.c.l.b16 %v339
      %v614 = vunpack.c.h.b16 %v339
      %v615 = vunpack.c.l.b16 %v340
      %v616 = vunpack.c.h.b16 %v340
      %v617 = vunpack.c.l.b16 %v341
      %v618 = vunpack.c.l.b16 %v342
      %v619 = vunpack.c.h.b16 %v342
      %v620 = vunpack.c.l.b16 %v343
      %v621 = vunpack.c.h.b16 %v343
      %v622 = vunpack.c.l.b16 %v344
      %v623 = vunpack.c.l.b16 %v345
      %v624 = vunpack.c.h.b16 %v345
      %v625 = vunpack.c.l.b16 %v346
      %v626 = vunpack.c.h.b16 %v346
      %v627 = vunpack.c.l.b16 %v347
      %v628 = vunpack.c.l.b16 %v348
      %v629 = vunpack.c.h.b16 %v348
      %v630 = vunpack.c.l.b16 %v349
      %v631 = vunpack.c.h.b16 %v349
      %v632 = vunpack.c.l.b16 %v350
      %v633 = vunpack.c.l.b16 %v351
      %v634 = vunpack.c.h.b16 %v351
      %v635 = vunpack.c.l.b16 %v352
      %v636 = vunpack.c.h.b16 %v352
      %v637 = vunpack.c.l.b16 %v353
      %v638 = vunpack.c.l.b16 %v354
      %v639 = vunpack.c.h.b16 %v354
      %v640 = vunpack.c.l.b16 %v355
      %v641 = vunpack.c.h.b16 %v355
      %v642 = vunpack.c.l.b16 %v356
      %v643 = vunpack.c.l.b16 %v357
      %v644 = vunpack.c.h.b16 %v357
      %v645 = vunpack.c.l.b16 %v358
      %v646 = vunpack.c.h.b16 %v358
      %v647 = vunpack.c.l.b16 %v359
      %v648 = vunpack.c.l.b16 %v360
      %v649 = vunpack.c.h.b16 %v360
      %v650 = vunpack.c.l.b16 %v361
      %v651 = vunpack.c.h.b16 %v361
      %v652 = vunpack.c.l.b16 %v362
      %v653 = vunpack.c.l.b16 %v363
      %v654 = vunpack.c.h.b16 %v363
      %v655 = vunpack.c.l.b16 %v364
      %v656 = vunpack.c.h.b16 %v364
      %v657 = vunpack.c.l.b16 %v365
      %v658 = vunpack.c.l.b16 %v366
      %v659 = vunpack.c.h.b16 %v366
      %v660 = vunpack.c.l.b16 %v367
      %v661 = vunpack.c.h.b16 %v367
      %v662 = vunpack.c.l.b16 %v368
      %v663 = vunpack.c.l.b16 %v369
      %v664 = vunpack.c.h.b16 %v369
      %v665 = vunpack.c.l.b16 %v370
      %v666 = vunpack.c.h.b16 %v370
      %v667 = vunpack.c.l.b16 %v371
      %v668 = vunpack.c.l.b16 %v372
      %v669 = vunpack.c.h.b16 %v372
      %v670 = vunpack.c.l.b16 %v373
      %v671 = vunpack.c.h.b16 %v373
      %v672 = vunpack.c.l.b16 %v374
      %v673 = vunpack.c.l.b16 %v375
      %v674 = vunpack.c.h.b16 %v375
      %v675 = vunpack.c.l.b16 %v376
      %v676 = vunpack.c.h.b16 %v376
      %v677 = vunpack.c.l.b16 %v377
      %v678 = vunpack.c.l.b16 %v378
      %v679 = vunpack.c.h.b16 %v378
      %v680 = vunpack.c.l.b16 %v379
      %v681 = vunpack.c.h.b16 %v379
      %v682 = vunpack.c.l.b16 %v380
      %v683 = vunpack.c.l.b16 %v381
      %v684 = vunpack.c.h.b16 %v381
      %v685 = vunpack.c.l.b16 %v382
      %v686 = vunpack.c.h.b16 %v382
      %v687 = vunpack.c.l.b16 %v383
      %v688 = vunpack.c.l.b16 %v384
      %v689 = vunpack.c.h.b16 %v384
      %v690 = vunpack.c.l.b16 %v385
      %v691 = vunpack.c.h.b16 %v385
      %v692 = vunpack.c.l.b16 %v386
      %v693 = vunpack.c.l.b16 %v387
      %v694 = vunpack.c.h.b16 %v387
      %v695 = vunpack.c.l.b16 %v388
      %v696 = vunpack.c.h.b16 %v388
      %v697 = vunpack.c.l.b16 %v389
      %v698 = vunpack.c.l.b16 %v390
      %v699 = vunpack.c.h.b16 %v390
      %v700 = vunpack.c.l.b16 %v391
      %v701 = vunpack.c.h.b16 %v391
      %v702 = vunpack.c.l.b16 %v392
      %v703 = vunpack.c.l.b16 %v393
      %v704 = vunpack.c.h.b16 %v393
      %v705 = vunpack.c.l.b16 %v394
      %v706 = vunpack.c.h.b16 %v394
      %v707 = vunpack.c.l.b16 %v395
      %v708 = vunpack.c.l.b16 %v396
      %v709 = vunpack.c.h.b16 %v396
      %v710 = vunpack.c.l.b16 %v397
      %v711 = vunpack.c.h.b16 %v397
      %v712 = vunpack.c.l.b16 %v398
      %v713 = vunpack.c.l.b16 %v399
      %v714 = vunpack.c.h.b16 %v399
      %v715 = vunpack.c.l.b16 %v400
      %v716 = vunpack.c.h.b16 %v400
      %v717 = vunpack.c.l.b16 %v401
      %v718 = vunpack.c.l.b16 %v402
      %v719 = vunpack.c.h.b16 %v402
      %v720 = vunpack.c.l.b16 %v403
      %v721 = vunpack.c.h.b16 %v403
      %v722 = vunpack.c.l.b16 %v404
      %v723 = vunpack.c.l.b16 %v405
      %v724 = vunpack.c.h.b16 %v405
      %v725 = vunpack.c.l.b16 %v406
      %v726 = vunpack.c.h.b16 %v406
      %v727 = vunpack.c.l.b16 %v407
      %v728 = vunpack.c.l.b16 %v408
      %v729 = vunpack.c.h.b16 %v408
      %v730 = vunpack.c.l.b16 %v409
      %v731 = vunpack.c.h.b16 %v409
      %v732 = vunpack.c.l.b16 %v410
      %v733 = vunpack.c.l.b16 %v411
      %v734 = vunpack.c.h.b16 %v411
      %v735 = vunpack.c.l.b16 %v412
      %v736 = vunpack.c.h.b16 %v412
      %v737 = vunpack.c.l.b16 %v413
      %v738 = vunpack.c.l.b16 %v414
      %v739 = vunpack.c.h.b16 %v414
      %v740 = vunpack.c.l.b16 %v415
      %v741 = vunpack.c.h.b16 %v415
      %v742 = vunpack.c.l.b16 %v416
      %v743 = vunpack.c.l.b16 %v417
      %v744 = vunpack.c.h.b16 %v417
      %v745 = vunpack.c.l.b16 %v418
      %v746 = vunpack.c.h.b16 %v418
      %v747 = vunpack.c.l.b16 %v419
      %v748 = vunpack.c.l.b16 %v420
      %v749 = vunpack.c.h.b16 %v420
      %v750 = vunpack.c.l.b16 %v421
      %v751 = vunpack.c.h.b16 %v421
      %v752 = vunpack.c.l.b16 %v422
      %v753 = vunpack.c.l.b16 %v423
      %v754 = vunpack.c.h.b16 %v423
      %v755 = vunpack.c.l.b16 %v424
      %v756 = vunpack.c.h.b16 %v424
      %v757 = vunpack.c.l.b16 %v425
      %v758 = vunpack.c.l.b16 %v426
      %v759 = vunpack.c.h.b16 %v426
      %v760 = vunpack.c.l.b16 %v427
      %v761 = vunpack.c.h.b16 %v427
      %v762 = vunpack.c.l.b16 %v428
      %v763 = vunpack.c.l.b16 %v429
      %v764 = vunpack.c.h.b16 %v429
      %v765 = vunpack.c.l.b16 %v430
      %v766 = vunpack.c.h.b16 %v430
      %v767 = vunpack.c.l.b16 %v431
      %v768 = vpack.c.b16 %v613, %v608
      %v769 = vpack.c.b16 %v614, %v609
      %v770 = vpack.c.b16 %v615, %v610
      %v771 = vpack.c.b16 %v616, %v611
      %v772 = vpack.c.b16 %v617, %v612
      %v773 = vpack.c.b16 %v623, %v618
      %v774 = vpack.c.b16 %v624, %v619
      %v775 = vpack.c.b16 %v625, %v620
      %v776 = vpack.c.b16 %v626, %v621
      %v777 = vpack.c.b16 %v627, %v622
      %v778 = vpack.c.b16 %v633, %v628
      %v779 = vpack.c.b16 %v634, %v629
      %v780 = vpack.c.b16 %v635, %v630
      %v781 = vpack.c.b16 %v636, %v631
      %v782 = vpack.c.b16 %v637, %v632
      %v783 = vpack.c.b16 %v643, %v638
      %v784 = vpack.c.b16 %v644, %v639
      %v785 = vpack.c.b16 %v645, %v640
      %v786 = vpack.c.b16 %v646, %v641
      %v787 = vpack.c.b16 %v647, %v642
      %v788 = vpack.c.b16 %v653, %v648
      %v789 = vpack.c.b16 %v654, %v649
      %v790 = vpack.c.b16 %v655, %v650
      %v791 = vpack.c.b16 %v656, %v651
      %v792 = vpack.c.b16 %v657, %v652
      %v793 = vpack.c.b16 %v663, %v658
      %v794 = vpack.c.b16 %v664, %v659
      %v795 = vpack.c.b16 %v665, %v660
      %v796 = vpack.c.b16 %v666, %v661
      %v797 = vpack.c.b16 %v667, %v662
      %v798 = vpack.c.b16 %v673, %v668
      %v799 = vpack.c.b16 %v674, %v669
      %v800 = vpack.c.b16 %v675, %v670
      %v801 = vpack.c.b16 %v676, %v671
      %v802 = vpack.c.b16 %v677, %v672
      %v803 = vpack.c.b16 %v683, %v678
      %v804 = vpack.c.b16 %v684, %v679
      %v805 = vpack.c.b16 %v685, %v680
      %v806 = vpack.c.b16 %v686, %v681
      %v807 = vpack.c.b16 %v687, %v682
      %v808 = vpack.c.b16 %v693, %v688
      %v809 = vpack.c.b16 %v694, %v689
      %v810 = vpack.c.b16 %v695, %v690
      %v811 = vpack.c.b16 %v696, %v691
      %v812 = vpack.c.b16 %v697, %v692
      %v813 = vpack.c.b16 %v703, %v698
      %v814 = vpack.c.b16 %v704, %v699
      %v815 = vpack.c.b16 %v705, %v700
      %v816 = vpack.c.b16 %v706, %v701
      %v817 = vpack.c.b16 %v707, %v702
      %v818 = vpack.c.b16 %v713, %v708
      %v819 = vpack.c.b16 %v714, %v709
      %v820 = vpack.c.b16 %v715, %v710
      %v821 = vpack.c.b16 %v716, %v711
      %v822 = vpack.c.b16 %v717, %v712
      %v823 = vpack.c.b16 %v723, %v718
      %v824 = vpack.c.b16 %v724, %v719
      %v825 = vpack.c.b16 %v725, %v720
      %v826 = vpack.c.b16 %v726, %v721
      %v827 = vpack.c.b16 %v727, %v722
      %v828 = vpack.c.b16 %v733, %v728
      %v829 = vpack.c.b16 %v734, %v729
      %v830 = vpack.c.b16 %v735, %v730
      %v831 = vpack.c.b16 %v736, %v731
      %v832 = vpack.c.b16 %v737, %v732
      %v833 = vpack.c.b16 %v743, %v738
      %v834 = vpack.c.b16 %v744, %v739
      %v835 = vpack.c.b16 %v745, %v740
      %v836 = vpack.c.b16 %v746, %v741
      %v837 = vpack.c.b16 %v747, %v742
      %v838 = vpack.c.b16 %v753, %v748
      %v839 = vpack.c.b16 %v754, %v749
      %v840 = vpack.c.b16 %v755, %v750
      %v841 = vpack.c.b16 %v756, %v751
      %v842 = vpack.c.b16 %v757, %v752
      %v843 = vpack.c.b16 %v763, %v758
      %v844 = vpack.c.b16 %v764, %v759
      %v845 = vpack.c.b16 %v765, %v760
      %v846 = vpack.c.b16 %v766, %v761
      %v847 = vpack.c.b16 %v767, %v762
      %v1008 = vunpack.c.l.b16 %v432
      %v1009 = vunpack.c.l.b16 %v433
      %v1010 = vunpack.c.l.b16 %v434
      %v1011 = vunpack.c.l.b16 %v435
      %v1012 = vunpack.c.l.b16 %v436
      %v1013 = vunpack.c.l.b16 %v437
      %v1014 = vunpack.c.l.b16 %v438
      %v1015 = vunpack.c.l.b16 %v439
      %v1016 = vunpack.c.l.b16 %v440
      %v1017 = vunpack.c.l.b16 %v441
      %v1018 = vunpack.c.l.b16 %v442
      %v1019 = vunpack.c.l.b16 %v443
      %v1020 = vunpack.c.l.b16 %v444
      %v1021 = vunpack.c.l.b16 %v445
      %v1022 = vunpack.c.l.b16 %v446
      %v1023 = vunpack.c.l.b16 %v447
      %v1024 = vunpack.c.l.b16 %v448
      %v1025 = vunpack.c.l.b16 %v449
      %v1026 = vunpack.c.l.b16 %v450
      %v1027 = vunpack.c.l.b16 %v451
      %v1028 = vunpack.c.l.b16 %v452
      %v1029 = vunpack.c.l.b16 %v453
      %v1030 = vunpack.c.l.b16 %v454
      %v1031 = vunpack.c.l.b16 %v455
      %v1032 = vunpack.c.l.b16 %v456
      %v1033 = vunpack.c.l.b16 %v457
      %v1034 = vunpack.c.l.b16 %v458
      %v1035 = vunpack.c.l.b16 %v459
      %v1036 = vunpack.c.l.b16 %v460
      %v1037 = vunpack.c.l.b16 %v461
      %v1038 = vunpack.c.l.b16 %v462
      %v1039 = vunpack.c.l.b16 %v463
      %v1040 = vunpack.c.l.b16 %v464
      %v1041 = vunpack.c.l.b16 %v465
      %v1042 = vunpack.c.l.b16 %v466
      %v1043 = vunpack.c.l.b16 %v467
      %v1044 = vunpack.c.l.b16 %v468
      %v1045 = vunpack.c.l.b16 %v469
      %v1046 = vunpack.c.l.b16 %v470
      %v1047 = vunpack.c.l.b16 %v471
      %v1048 = vunpack.c.l.b16 %v472
      %v1049 = vunpack.c.l.b16 %v473
      %v1050 = vunpack.c.l.b16 %v474
      %v1051 = vunpack.c.l.b16 %v475
      %v1052 = vunpack.c.l.b16 %v476
      %v1053 = vunpack.c.l.b16 %v477
      %v1054 = vunpack.c.l.b16 %v478
      %v1055 = vunpack.c.l.b16 %v479
      %v1056 = vunpack.c.l.b16 %v480
      %v1057 = vunpack.c.l.b16 %v481
      %v1058 = vunpack.c.l.b16 %v482
      %v1059 = vunpack.c.l.b16 %v483
      %v1060 = vunpack.c.l.b16 %v484
      %v1061 = vunpack.c.l.b16 %v485
      %v1062 = vunpack.c.l.b16 %v486
      %v1063 = vunpack.c.l.b16 %v487
      %v1064 = vunpack.c.l.b16 %v488
      %v1065 = vunpack.c.l.b16 %v489
      %v1066 = vunpack.c.l.b16 %v490
      %v1067 = vunpack.c.l.b16 %v491
      %v1068 = vunpack.c.l.b16 %v492
      %v1069 = vunpack.c.l.b16 %v493
      %v1070 = vunpack.c.l.b16 %v494
      %v1071 = vunpack.c.l.b16 %v495
      %v1072 = vunpack.c.l.b16 %v496
      %v1073 = vunpack.c.l.b16 %v497
      %v1074 = vunpack.c.l.b16 %v498
      %v1075 = vunpack.c.l.b16 %v499
      %v1076 = vunpack.c.l.b16 %v500
      %v1077 = vunpack.c.l.b16 %v501
      %v1078 = vunpack.c.l.b16 %v502
      %v1079 = vunpack.c.l.b16 %v503
      %v1080 = vunpack.c.l.b16 %v504
      %v1081 = vunpack.c.l.b16 %v505
      %v1082 = vunpack.c.l.b16 %v506
      %v1083 = vunpack.c.l.b16 %v507
      %v1084 = vunpack.c.l.b16 %v508
      %v1085 = vunpack.c.l.b16 %v509
      %v1086 = vunpack.c.l.b16 %v510
      %v1087 = vunpack.c.l.b16 %v511
      %v1088 = vpack.c.b16 %v1009, %v1008
      %v1089 = vpack.c.b16 %v1011, %v1010
      %v1090 = vpack.c.b16 %v1013, %v1012
      %v1091 = vpack.c.b16 %v1015, %v1014
      %v1092 = vpack.c.b16 %v1017, %v1016
      %v1093 = vpack.c.b16 %v1019, %v1018
      %v1094 = vpack.c.b16 %v1021, %v1020
      %v1095 = vpack.c.b16 %v1023, %v1022
      %v1096 = vpack.c.b16 %v1025, %v1024
      %v1097 = vpack.c.b16 %v1027, %v1026
      %v1098 = vpack.c.b16 %v1029, %v1028
      %v1099 = vpack.c.b16 %v1031, %v1030
      %v1100 = vpack.c.b16 %v1033, %v1032
      %v1101 = vpack.c.b16 %v1035, %v1034
      %v1102 = vpack.c.b16 %v1037, %v1036
      %v1103 = vpack.c.b16 %v1039, %v1038
      %v1104 = vpack.c.b16 %v1041, %v1040
      %v1105 = vpack.c.b16 %v1043, %v1042
      %v1106 = vpack.c.b16 %v1045, %v1044
      %v1107 = vpack.c.b16 %v1047, %v1046
      %v1108 = vpack.c.b16 %v1049, %v1048
      %v1109 = vpack.c.b16 %v1051, %v1050
      %v1110 = vpack.c.b16 %v1053, %v1052
      %v1111 = vpack.c.b16 %v1055, %v1054
      %v1112 = vpack.c.b16 %v1057, %v1056
      %v1113 = vpack.c.b16 %v1059, %v1058
      %v1114 = vpack.c.b16 %v1061, %v1060
      %v1115 = vpack.c.b16 %v1063, %v1062
      %v1116 = vpack.c.b16 %v1065, %v1064
      %v1117 = vpack.c.b16 %v1067, %v1066
      %v1118 = vpack.c.b16 %v1069, %v1068
      %v1119 = vpack.c.b16 %v1071, %v1070
      %v1120 = vpack.c.b16 %v1073, %v1072
      %v1121 = vpack.c.b16 %v1075, %v1074
      %v1122 = vpack.c.b16 %v1077, %v1076
      %v1123 = vpack.c.b16 %v1079, %v1078
      %v1124 = vpack.c.b16 %v1081, %v1080
      %v1125 = vpack.c.b16 %v1083, %v1082
      %v1126 = vpack.c.b16 %v1085, %v1084
      %v1127 = vpack.c.b16 %v1087, %v1086
      %1168 = vmatprep.subr.bf16.mxu0 0
      %1169 = vmatpush1.bf16.msra.mxu0 %v1088
      %1170 = vmatprep.subr.bf16.mxu0 0
      %1171 = vmatpush1.bf16.msra.mxu0 %v1089
      %1172 = vmatprep.subr.bf16.mxu0 0
      %1173 = vmatpush1.bf16.msra.mxu0 %v1090
      %1174 = vmatprep.subr.bf16.mxu0 0
      %1175 = vmatpush1.bf16.msra.mxu0 %v1091
      %1176 = vmatprep.subr.bf16.mxu0 0
      %1177 = vmatpush1.bf16.msra.mxu0 %v1092
      %1178 = vmatprep.subr.bf16.mxu0 0
      %1179 = vmatpush1.bf16.msra.mxu0 %v1093
      %1180 = vmatprep.subr.bf16.mxu0 0
      %1181 = vmatpush1.bf16.msra.mxu0 %v1094
      %1182 = vmatprep.subr.bf16.mxu0 0
      %1183 = vmatpush1.bf16.msra.mxu0 %v1095
      %1184 = vmatprep.subr.bf16.mxu0 0
      %1185 = vmatpush1.bf16.msra.mxu0 %v1096
      %1186 = vmatprep.subr.bf16.mxu0 0
      %1187 = vmatpush1.bf16.msra.mxu0 %v1097
      %1188 = vmatprep.subr.bf16.mxu0 0
      %1189 = vmatpush1.bf16.msra.mxu0 %v1098
      %1190 = vmatprep.subr.bf16.mxu0 0
      %1191 = vmatpush1.bf16.msra.mxu0 %v1099
      %1192 = vmatprep.subr.bf16.mxu0 0
      %1193 = vmatpush1.bf16.msra.mxu0 %v1100
      %1194 = vmatprep.subr.bf16.mxu0 0
      %1195 = vmatpush1.bf16.msra.mxu0 %v1101
      %1196 = vmatprep.subr.bf16.mxu0 0
      %1197 = vmatpush1.bf16.msra.mxu0 %v1102
      %1198 = vmatprep.subr.bf16.mxu0 0
      %1199 = vmatpush1.bf16.msra.mxu0 %v1103
      %1200 = vmatprep.mubr.bf16.mxu0 %v769
      %1201 = vmatmul.mubr.bf16.gmra.mrb[0].mxu0 %v768
      %v1202 = vpop.f32.mrb[0].mxu0
      %v1203 = vadd.f32 0.0, %v1202
      %v1204 = vpop.f32.mrb[0].mxu0
      %v1205 = vpop.f32.mrb[0].mxu0
      %v1206 = vadd.f32 0.0, %v1205
      %v1207 = vpop.f32.mrb[0].mxu0
      %1208 = vmatprep.mubr.bf16.mxu0 %v774
      %1209 = vmatmul.mubr.bf16.gmra.mrb[0].mxu0 %v773
      %v1210 = vpop.f32.mrb[0].mxu0
      %v1211 = vadd.f32 0.0, %v1210
      %v1212 = vpop.f32.mrb[0].mxu0
      %v1213 = vpop.f32.mrb[0].mxu0
      %v1214 = vadd.f32 0.0, %v1213
      %v1215 = vpop.f32.mrb[0].mxu0
      %1216 = vmatprep.mubr.bf16.mxu0 %v779
      %1217 = vmatmul.mubr.bf16.gmra.mrb[0].mxu0 %v778
      %v1218 = vpop.f32.mrb[0].mxu0
      %v1219 = vadd.f32 0.0, %v1218
      %v1220 = vpop.f32.mrb[0].mxu0
      %v1221 = vpop.f32.mrb[0].mxu0
      %v1222 = vadd.f32 0.0, %v1221
      %v1223 = vpop.f32.mrb[0].mxu0
      %1224 = vmatprep.mubr.bf16.mxu0 %v784
      %1225 = vmatmul.mubr.bf16.gmra.mrb[0].mxu0 %v783
      %v1226 = vpop.f32.mrb[0].mxu0
      %v1227 = vadd.f32 0.0, %v1226
      %v1228 = vpop.f32.mrb[0].mxu0
      %v1229 = vpop.f32.mrb[0].mxu0
      %v1230 = vadd.f32 0.0, %v1229
      %v1231 = vpop.f32.mrb[0].mxu0
      %1232 = vmatprep.mubr.bf16.mxu0 %v789
      %1233 = vmatmul.mubr.bf16.gmra.mrb[0].mxu0 %v788
      %v1234 = vpop.f32.mrb[0].mxu0
      %v1235 = vadd.f32 0.0, %v1234
      %v1236 = vpop.f32.mrb[0].mxu0
      %v1237 = vpop.f32.mrb[0].mxu0
      %v1238 = vadd.f32 0.0, %v1237
      %v1239 = vpop.f32.mrb[0].mxu0
      %1240 = vmatprep.mubr.bf16.mxu0 %v794
      %1241 = vmatmul.mubr.bf16.gmra.mrb[0].mxu0 %v793
      %v1242 = vpop.f32.mrb[0].mxu0
      %v1243 = vadd.f32 0.0, %v1242
      %v1244 = vpop.f32.mrb[0].mxu0
      %v1245 = vpop.f32.mrb[0].mxu0
      %v1246 = vadd.f32 0.0, %v1245
      %v1247 = vpop.f32.mrb[0].mxu0
      %1248 = vmatprep.mubr.bf16.mxu0 %v799
      %1249 = vmatmul.mubr.bf16.gmra.mrb[0].mxu0 %v798
      %v1250 = vpop.f32.mrb[0].mxu0
      %v1251 = vadd.f32 0.0, %v1250
      %v1252 = vpop.f32.mrb[0].mxu0
      %v1253 = vpop.f32.mrb[0].mxu0
      %v1254 = vadd.f32 0.0, %v1253
      %v1255 = vpop.f32.mrb[0].mxu0
      %1256 = vmatprep.mubr.bf16.mxu0 %v804
      %1257 = vmatmul.mubr.bf16.gmra.mrb[0].mxu0 %v803
      %v1258 = vpop.f32.mrb[0].mxu0
      %v1259 = vadd.f32 0.0, %v1258
      %v1260 = vpop.f32.mrb[0].mxu0
      %v1261 = vpop.f32.mrb[0].mxu0
      %v1262 = vadd.f32 0.0, %v1261
      %v1263 = vpop.f32.mrb[0].mxu0
      %1264 = vmatprep.mubr.bf16.mxu0 %v809
      %1265 = vmatmul.mubr.bf16.gmra.mrb[0].mxu0 %v808
      %v1266 = vpop.f32.mrb[0].mxu0
      %v1267 = vadd.f32 0.0, %v1266
      %v1268 = vpop.f32.mrb[0].mxu0
      %v1269 = vpop.f32.mrb[0].mxu0
      %v1270 = vadd.f32 0.0, %v1269
      %v1271 = vpop.f32.mrb[0].mxu0
      %1272 = vmatprep.mubr.bf16.mxu0 %v814
      %1273 = vmatmul.mubr.bf16.gmra.mrb[0].mxu0 %v813
      %v1274 = vpop.f32.mrb[0].mxu0
      %v1275 = vadd.f32 0.0, %v1274
      %v1276 = vpop.f32.mrb[0].mxu0
      %v1277 = vpop.f32.mrb[0].mxu0
      %v1278 = vadd.f32 0.0, %v1277
      %v1279 = vpop.f32.mrb[0].mxu0
      %1280 = vmatprep.mubr.bf16.mxu0 %v819
      %1281 = vmatmul.mubr.bf16.gmra.mrb[0].mxu0 %v818
      %v1282 = vpop.f32.mrb[0].mxu0
      %v1283 = vadd.f32 0.0, %v1282
      %v1284 = vpop.f32.mrb[0].mxu0
      %v1285 = vpop.f32.mrb[0].mxu0
      %v1286 = vadd.f32 0.0, %v1285
      %v1287 = vpop.f32.mrb[0].mxu0
      %1288 = vmatprep.mubr.bf16.mxu0 %v824
      %1289 = vmatmul.mubr.bf16.gmra.mrb[0].mxu0 %v823
      %v1290 = vpop.f32.mrb[0].mxu0
      %v1291 = vadd.f32 0.0, %v1290
      %v1292 = vpop.f32.mrb[0].mxu0
      %v1293 = vpop.f32.mrb[0].mxu0
      %v1294 = vadd.f32 0.0, %v1293
      %v1295 = vpop.f32.mrb[0].mxu0
      %1296 = vmatprep.mubr.bf16.mxu0 %v829
      %1297 = vmatmul.mubr.bf16.gmra.mrb[0].mxu0 %v828
      %v1298 = vpop.f32.mrb[0].mxu0
      %v1299 = vadd.f32 0.0, %v1298
      %v1300 = vpop.f32.mrb[0].mxu0
      %v1301 = vpop.f32.mrb[0].mxu0
      %v1302 = vadd.f32 0.0, %v1301
      %v1303 = vpop.f32.mrb[0].mxu0
      %1304 = vmatprep.mubr.bf16.mxu0 %v834
      %1305 = vmatmul.mubr.bf16.gmra.mrb[0].mxu0 %v833
      %v1306 = vpop.f32.mrb[0].mxu0
      %v1307 = vadd.f32 0.0, %v1306
      %v1308 = vpop.f32.mrb[0].mxu0
      %v1309 = vpop.f32.mrb[0].mxu0
      %v1310 = vadd.f32 0.0, %v1309
      %v1311 = vpop.f32.mrb[0].mxu0
      %1312 = vmatprep.mubr.bf16.mxu0 %v839
      %1313 = vmatmul.mubr.bf16.gmra.mrb[0].mxu0 %v838
      %v1314 = vpop.f32.mrb[0].mxu0
      %v1315 = vadd.f32 0.0, %v1314
      %v1316 = vpop.f32.mrb[0].mxu0
      %v1317 = vpop.f32.mrb[0].mxu0
      %v1318 = vadd.f32 0.0, %v1317
      %v1319 = vpop.f32.mrb[0].mxu0
      %1320 = vmatprep.mubr.bf16.mxu0 %v844
      %1321 = vmatmul.mubr.bf16.gmra.mrb[0].mxu0 %v843
      %v1322 = vpop.f32.mrb[0].mxu0
      %v1323 = vadd.f32 0.0, %v1322
      %v1324 = vpop.f32.mrb[0].mxu0
      %v1325 = vpop.f32.mrb[0].mxu0
      %v1326 = vadd.f32 0.0, %v1325
      %v1327 = vpop.f32.mrb[0].mxu0
      %1328 = vdwg.mxu0
      %1329 = vmatprep.subr.bf16.mxu0 0
      %1330 = vmatpush1.bf16.msra.mxu0 %v1104
      %1331 = vmatprep.subr.bf16.mxu0 0
      %1332 = vmatpush1.bf16.msra.mxu0 %v1105
      %1333 = vmatprep.subr.bf16.mxu0 0
      %1334 = vmatpush1.bf16.msra.mxu0 %v1106
      %1335 = vmatprep.subr.bf16.mxu0 0
      %1336 = vmatpush1.bf16.msra.mxu0 %v1107
      %1337 = vmatprep.subr.bf16.mxu0 0
      %1338 = vmatpush1.bf16.msra.mxu0 %v1108
      %1339 = vmatprep.subr.bf16.mxu0 0
      %1340 = vmatpush1.bf16.msra.mxu0 %v1109
      %1341 = vmatprep.subr.bf16.mxu0 0
      %1342 = vmatpush1.bf16.msra.mxu0 %v1110
      %1343 = vmatprep.subr.bf16.mxu0 0
      %1344 = vmatpush1.bf16.msra.mxu0 %v1111
      %1345 = vmatprep.subr.bf16.mxu0 0
      %1346 = vmatpush1.bf16.msra.mxu0 %v1112
      %1347 = vmatprep.subr.bf16.mxu0 0
      %1348 = vmatpush1.bf16.msra.mxu0 %v1113
      %1349 = vmatprep.subr.bf16.mxu0 0
      %1350 = vmatpush1.bf16.msra.mxu0 %v1114
      %1351 = vmatprep.subr.bf16.mxu0 0
      %1352 = vmatpush1.bf16.msra.mxu0 %v1115
      %1353 = vmatprep.subr.bf16.mxu0 0
      %1354 = vmatpush1.bf16.msra.mxu0 %v1116
      %1355 = vmatprep.subr.bf16.mxu0 0
      %1356 = vmatpush1.bf16.msra.mxu0 %v1117
      %1357 = vmatprep.subr.bf16.mxu0 0
      %1358 = vmatpush1.bf16.msra.mxu0 %v1118
      %1359 = vmatprep.subr.bf16.mxu0 0
      %1360 = vmatpush1.bf16.msra.mxu0 %v1119
      %1361 = vmatprep.mubr.bf16.mxu0 %v771
      %1362 = vmatmul.mubr.bf16.gmra.mrb[0].mxu0 %v770
      %v1363 = vpop.f32.mrb[0].mxu0
      %v1364 = vadd.f32 %v1203, %v1363
      %v1365 = vpop.f32.mrb[0].mxu0
      %v1366 = vpop.f32.mrb[0].mxu0
      %v1367 = vadd.f32 %v1206, %v1366
      %v1368 = vpop.f32.mrb[0].mxu0
      %1369 = vmatprep.mubr.bf16.mxu0 %v776
      %1370 = vmatmul.mubr.bf16.gmra.mrb[0].mxu0 %v775
      %v1371 = vpop.f32.mrb[0].mxu0
      %v1372 = vadd.f32 %v1211, %v1371
      %v1373 = vpop.f32.mrb[0].mxu0
      %v1374 = vpop.f32.mrb[0].mxu0
      %v1375 = vadd.f32 %v1214, %v1374
      %v1376 = vpop.f32.mrb[0].mxu0
      %1377 = vmatprep.mubr.bf16.mxu0 %v781
      %1378 = vmatmul.mubr.bf16.gmra.mrb[0].mxu0 %v780
      %v1379 = vpop.f32.mrb[0].mxu0
      %v1380 = vadd.f32 %v1219, %v1379
      %v1381 = vpop.f32.mrb[0].mxu0
      %v1382 = vpop.f32.mrb[0].mxu0
      %v1383 = vadd.f32 %v1222, %v1382
      %v1384 = vpop.f32.mrb[0].mxu0
      %1385 = vmatprep.mubr.bf16.mxu0 %v786
      %1386 = vmatmul.mubr.bf16.gmra.mrb[0].mxu0 %v785
      %v1387 = vpop.f32.mrb[0].mxu0
      %v1388 = vadd.f32 %v1227, %v1387
      %v1389 = vpop.f32.mrb[0].mxu0
      %v1390 = vpop.f32.mrb[0].mxu0
      %v1391 = vadd.f32 %v1230, %v1390
      %v1392 = vpop.f32.mrb[0].mxu0
      %1393 = vmatprep.mubr.bf16.mxu0 %v791
      %1394 = vmatmul.mubr.bf16.gmra.mrb[0].mxu0 %v790
      %v1395 = vpop.f32.mrb[0].mxu0
      %v1396 = vadd.f32 %v1235, %v1395
      %v1397 = vpop.f32.mrb[0].mxu0
      %v1398 = vpop.f32.mrb[0].mxu0
      %v1399 = vadd.f32 %v1238, %v1398
      %v1400 = vpop.f32.mrb[0].mxu0
      %1401 = vmatprep.mubr.bf16.mxu0 %v796
      %1402 = vmatmul.mubr.bf16.gmra.mrb[0].mxu0 %v795
      %v1403 = vpop.f32.mrb[0].mxu0
      %v1404 = vadd.f32 %v1243, %v1403
      %v1405 = vpop.f32.mrb[0].mxu0
      %v1406 = vpop.f32.mrb[0].mxu0
      %v1407 = vadd.f32 %v1246, %v1406
      %v1408 = vpop.f32.mrb[0].mxu0
      %1409 = vmatprep.mubr.bf16.mxu0 %v801
      %1410 = vmatmul.mubr.bf16.gmra.mrb[0].mxu0 %v800
      %v1411 = vpop.f32.mrb[0].mxu0
      %v1412 = vadd.f32 %v1251, %v1411
      %v1413 = vpop.f32.mrb[0].mxu0
      %v1414 = vpop.f32.mrb[0].mxu0
      %v1415 = vadd.f32 %v1254, %v1414
      %v1416 = vpop.f32.mrb[0].mxu0
      %1417 = vmatprep.mubr.bf16.mxu0 %v806
      %1418 = vmatmul.mubr.bf16.gmra.mrb[0].mxu0 %v805
      %v1419 = vpop.f32.mrb[0].mxu0
      %v1420 = vadd.f32 %v1259, %v1419
      %v1421 = vpop.f32.mrb[0].mxu0
      %v1422 = vpop.f32.mrb[0].mxu0
      %v1423 = vadd.f32 %v1262, %v1422
      %v1424 = vpop.f32.mrb[0].mxu0
      %1425 = vmatprep.mubr.bf16.mxu0 %v811
      %1426 = vmatmul.mubr.bf16.gmra.mrb[0].mxu0 %v810
      %v1427 = vpop.f32.mrb[0].mxu0
      %v1428 = vadd.f32 %v1267, %v1427
      %v1429 = vpop.f32.mrb[0].mxu0
      %v1430 = vpop.f32.mrb[0].mxu0
      %v1431 = vadd.f32 %v1270, %v1430
      %v1432 = vpop.f32.mrb[0].mxu0
      %1433 = vmatprep.mubr.bf16.mxu0 %v816
      %1434 = vmatmul.mubr.bf16.gmra.mrb[0].mxu0 %v815
      %v1435 = vpop.f32.mrb[0].mxu0
      %v1436 = vadd.f32 %v1275, %v1435
      %v1437 = vpop.f32.mrb[0].mxu0
      %v1438 = vpop.f32.mrb[0].mxu0
      %v1439 = vadd.f32 %v1278, %v1438
      %v1440 = vpop.f32.mrb[0].mxu0
      %1441 = vmatprep.mubr.bf16.mxu0 %v821
      %1442 = vmatmul.mubr.bf16.gmra.mrb[0].mxu0 %v820
      %v1443 = vpop.f32.mrb[0].mxu0
      %v1444 = vadd.f32 %v1283, %v1443
      %v1445 = vpop.f32.mrb[0].mxu0
      %v1446 = vpop.f32.mrb[0].mxu0
      %v1447 = vadd.f32 %v1286, %v1446
      %v1448 = vpop.f32.mrb[0].mxu0
      %1449 = vmatprep.mubr.bf16.mxu0 %v826
      %1450 = vmatmul.mubr.bf16.gmra.mrb[0].mxu0 %v825
      %v1451 = vpop.f32.mrb[0].mxu0
      %v1452 = vadd.f32 %v1291, %v1451
      %v1453 = vpop.f32.mrb[0].mxu0
      %v1454 = vpop.f32.mrb[0].mxu0
      %v1455 = vadd.f32 %v1294, %v1454
      %v1456 = vpop.f32.mrb[0].mxu0
      %1457 = vmatprep.mubr.bf16.mxu0 %v831
      %1458 = vmatmul.mubr.bf16.gmra.mrb[0].mxu0 %v830
      %v1459 = vpop.f32.mrb[0].mxu0
      %v1460 = vadd.f32 %v1299, %v1459
      %v1461 = vpop.f32.mrb[0].mxu0
      %v1462 = vpop.f32.mrb[0].mxu0
      %v1463 = vadd.f32 %v1302, %v1462
      %v1464 = vpop.f32.mrb[0].mxu0
      %1465 = vmatprep.mubr.bf16.mxu0 %v836
      %1466 = vmatmul.mubr.bf16.gmra.mrb[0].mxu0 %v835
      %v1467 = vpop.f32.mrb[0].mxu0
      %v1468 = vadd.f32 %v1307, %v1467
      %v1469 = vpop.f32.mrb[0].mxu0
      %v1470 = vpop.f32.mrb[0].mxu0
      %v1471 = vadd.f32 %v1310, %v1470
      %v1472 = vpop.f32.mrb[0].mxu0
      %1473 = vmatprep.mubr.bf16.mxu0 %v841
      %1474 = vmatmul.mubr.bf16.gmra.mrb[0].mxu0 %v840
      %v1475 = vpop.f32.mrb[0].mxu0
      %v1476 = vadd.f32 %v1315, %v1475
      %v1477 = vpop.f32.mrb[0].mxu0
      %v1478 = vpop.f32.mrb[0].mxu0
      %v1479 = vadd.f32 %v1318, %v1478
      %v1480 = vpop.f32.mrb[0].mxu0
      %1481 = vmatprep.mubr.bf16.mxu0 %v846
      %1482 = vmatmul.mubr.bf16.gmra.mrb[0].mxu0 %v845
      %v1483 = vpop.f32.mrb[0].mxu0
      %v1484 = vadd.f32 %v1323, %v1483
      %v1485 = vpop.f32.mrb[0].mxu0
      %v1486 = vpop.f32.mrb[0].mxu0
      %v1487 = vadd.f32 %v1326, %v1486
      %v1488 = vpop.f32.mrb[0].mxu0
      %1489 = vdwg.mxu0
      %1490 = vmatprep.subr.bf16.mxu0 0
      %1491 = vmatpush1.bf16.msra.mxu0 %v1120
      %1492 = vmatprep.subr.bf16.mxu0 0
      %1493 = vmatpush1.bf16.msra.mxu0 %v1121
      %1494 = vmatprep.subr.bf16.mxu0 0
      %1495 = vmatpush1.bf16.msra.mxu0 %v1122
      %1496 = vmatprep.subr.bf16.mxu0 0
      %1497 = vmatpush1.bf16.msra.mxu0 %v1123
      %1498 = vmatprep.subr.bf16.mxu0 0
      %1499 = vmatpush1.bf16.msra.mxu0 %v1124
      %1500 = vmatprep.subr.bf16.mxu0 0
      %1501 = vmatpush1.bf16.msra.mxu0 %v1125
      %1502 = vmatprep.subr.bf16.mxu0 0
      %1503 = vmatpush1.bf16.msra.mxu0 %v1126
      %1504 = vmatprep.subr.bf16.mxu0 0
      %1505 = vmatpush1.bf16.msra.mxu0 %v1127
      %1506 = vmatprep.subr.bf16.mxu0 0
      %1507 = vmatpush1.bf16.msra.mxu0 0
      %1508 = vmatprep.subr.bf16.mxu0 0
      %1509 = vmatpush1.bf16.msra.mxu0 0
      %1510 = vmatprep.subr.bf16.mxu0 0
      %1511 = vmatpush1.bf16.msra.mxu0 0
      %1512 = vmatprep.subr.bf16.mxu0 0
      %1513 = vmatpush1.bf16.msra.mxu0 0
      %1514 = vmatprep.subr.bf16.mxu0 0
      %1515 = vmatpush1.bf16.msra.mxu0 0
      %1516 = vmatprep.subr.bf16.mxu0 0
      %1517 = vmatpush1.bf16.msra.mxu0 0
      %1518 = vmatprep.subr.bf16.mxu0 0
      %1519 = vmatpush1.bf16.msra.mxu0 0
      %1520 = vmatprep.subr.bf16.mxu0 0
      %1521 = vmatpush1.bf16.msra.mxu0 0
      %1522 = vmatprep.mubr.bf16.mxu0 0
      %1523 = vmatmul.mubr.bf16.gmra.mrb[0].mxu0 %v772
      %v1524 = vpop.f32.mrb[0].mxu0
      %v1525 = vadd.f32 %v1364, %v1524
      %v1526 = vpop.f32.mrb[0].mxu0
      %v1527 = vpop.f32.mrb[0].mxu0
      %v1528 = vadd.f32 %v1367, %v1527
      %v1529 = vpop.f32.mrb[0].mxu0
      %1530 = vmatprep.mubr.bf16.mxu0 0
      %1531 = vmatmul.mubr.bf16.gmra.mrb[0].mxu0 %v777
      %v1532 = vpop.f32.mrb[0].mxu0
      %v1533 = vadd.f32 %v1372, %v1532
      %v1534 = vpop.f32.mrb[0].mxu0
      %v1535 = vpop.f32.mrb[0].mxu0
      %v1536 = vadd.f32 %v1375, %v1535
      %v1537 = vpop.f32.mrb[0].mxu0
      %1538 = vmatprep.mubr.bf16.mxu0 0
      %1539 = vmatmul.mubr.bf16.gmra.mrb[0].mxu0 %v782
      %v1540 = vpop.f32.mrb[0].mxu0
      %v1541 = vadd.f32 %v1380, %v1540
      %v1542 = vpop.f32.mrb[0].mxu0
      %v1543 = vpop.f32.mrb[0].mxu0
      %v1544 = vadd.f32 %v1383, %v1543
      %v1545 = vpop.f32.mrb[0].mxu0
      %1546 = vmatprep.mubr.bf16.mxu0 0
      %1547 = vmatmul.mubr.bf16.gmra.mrb[0].mxu0 %v787
      %v1548 = vpop.f32.mrb[0].mxu0
      %v1549 = vadd.f32 %v1388, %v1548
      %v1550 = vpop.f32.mrb[0].mxu0
      %v1551 = vpop.f32.mrb[0].mxu0
      %v1552 = vadd.f32 %v1391, %v1551
      %v1553 = vpop.f32.mrb[0].mxu0
      %1554 = vmatprep.mubr.bf16.mxu0 0
      %1555 = vmatmul.mubr.bf16.gmra.mrb[0].mxu0 %v792
      %v1556 = vpop.f32.mrb[0].mxu0
      %v1557 = vadd.f32 %v1396, %v1556
      %v1558 = vpop.f32.mrb[0].mxu0
      %v1559 = vpop.f32.mrb[0].mxu0
      %v1560 = vadd.f32 %v1399, %v1559
      %v1561 = vpop.f32.mrb[0].mxu0
      %1562 = vmatprep.mubr.bf16.mxu0 0
      %1563 = vmatmul.mubr.bf16.gmra.mrb[0].mxu0 %v797
      %v1564 = vpop.f32.mrb[0].mxu0
      %v1565 = vadd.f32 %v1404, %v1564
      %v1566 = vpop.f32.mrb[0].mxu0
      %v1567 = vpop.f32.mrb[0].mxu0
      %v1568 = vadd.f32 %v1407, %v1567
      %v1569 = vpop.f32.mrb[0].mxu0
      %1570 = vmatprep.mubr.bf16.mxu0 0
      %1571 = vmatmul.mubr.bf16.gmra.mrb[0].mxu0 %v802
      %v1572 = vpop.f32.mrb[0].mxu0
      %v1573 = vadd.f32 %v1412, %v1572
      %v1574 = vpop.f32.mrb[0].mxu0
      %v1575 = vpop.f32.mrb[0].mxu0
      %v1576 = vadd.f32 %v1415, %v1575
      %v1577 = vpop.f32.mrb[0].mxu0
      %1578 = vmatprep.mubr.bf16.mxu0 0
      %1579 = vmatmul.mubr.bf16.gmra.mrb[0].mxu0 %v807
      %v1580 = vpop.f32.mrb[0].mxu0
      %v1581 = vadd.f32 %v1420, %v1580
      %v1582 = vpop.f32.mrb[0].mxu0
      %v1583 = vpop.f32.mrb[0].mxu0
      %v1584 = vadd.f32 %v1423, %v1583
      %v1585 = vpop.f32.mrb[0].mxu0
      %1586 = vmatprep.mubr.bf16.mxu0 0
      %1587 = vmatmul.mubr.bf16.gmra.mrb[0].mxu0 %v812
      %v1588 = vpop.f32.mrb[0].mxu0
      %v1589 = vadd.f32 %v1428, %v1588
      %v1590 = vpop.f32.mrb[0].mxu0
      %v1591 = vpop.f32.mrb[0].mxu0
      %v1592 = vadd.f32 %v1431, %v1591
      %v1593 = vpop.f32.mrb[0].mxu0
      %1594 = vmatprep.mubr.bf16.mxu0 0
      %1595 = vmatmul.mubr.bf16.gmra.mrb[0].mxu0 %v817
      %v1596 = vpop.f32.mrb[0].mxu0
      %v1597 = vadd.f32 %v1436, %v1596
      %v1598 = vpop.f32.mrb[0].mxu0
      %v1599 = vpop.f32.mrb[0].mxu0
      %v1600 = vadd.f32 %v1439, %v1599
      %v1601 = vpop.f32.mrb[0].mxu0
      %1602 = vmatprep.mubr.bf16.mxu0 0
      %1603 = vmatmul.mubr.bf16.gmra.mrb[0].mxu0 %v822
      %v1604 = vpop.f32.mrb[0].mxu0
      %v1605 = vadd.f32 %v1444, %v1604
      %v1606 = vpop.f32.mrb[0].mxu0
      %v1607 = vpop.f32.mrb[0].mxu0
      %v1608 = vadd.f32 %v1447, %v1607
      %v1609 = vpop.f32.mrb[0].mxu0
      %1610 = vmatprep.mubr.bf16.mxu0 0
      %1611 = vmatmul.mubr.bf16.gmra.mrb[0].mxu0 %v827
      %v1612 = vpop.f32.mrb[0].mxu0
      %v1613 = vadd.f32 %v1452, %v1612
      %v1614 = vpop.f32.mrb[0].mxu0
      %v1615 = vpop.f32.mrb[0].mxu0
      %v1616 = vadd.f32 %v1455, %v1615
      %v1617 = vpop.f32.mrb[0].mxu0
      %1618 = vmatprep.mubr.bf16.mxu0 0
      %1619 = vmatmul.mubr.bf16.gmra.mrb[0].mxu0 %v832
      %v1620 = vpop.f32.mrb[0].mxu0
      %v1621 = vadd.f32 %v1460, %v1620
      %v1622 = vpop.f32.mrb[0].mxu0
      %v1623 = vpop.f32.mrb[0].mxu0
      %v1624 = vadd.f32 %v1463, %v1623
      %v1625 = vpop.f32.mrb[0].mxu0
      %1626 = vmatprep.mubr.bf16.mxu0 0
      %1627 = vmatmul.mubr.bf16.gmra.mrb[0].mxu0 %v837
      %v1628 = vpop.f32.mrb[0].mxu0
      %v1629 = vadd.f32 %v1468, %v1628
      %v1630 = vpop.f32.mrb[0].mxu0
      %v1631 = vpop.f32.mrb[0].mxu0
      %v1632 = vadd.f32 %v1471, %v1631
      %v1633 = vpop.f32.mrb[0].mxu0
      %1634 = vmatprep.mubr.bf16.mxu0 0
      %1635 = vmatmul.mubr.bf16.gmra.mrb[0].mxu0 %v842
      %v1636 = vpop.f32.mrb[0].mxu0
      %v1637 = vadd.f32 %v1476, %v1636
      %v1638 = vpop.f32.mrb[0].mxu0
      %v1639 = vpop.f32.mrb[0].mxu0
      %v1640 = vadd.f32 %v1479, %v1639
      %v1641 = vpop.f32.mrb[0].mxu0
      %1642 = vmatprep.mubr.bf16.mxu0 0
      %1643 = vmatmul.mubr.bf16.gmra.mrb[0].mxu0 %v847
      %v1644 = vpop.f32.mrb[0].mxu0
      %v1645 = vadd.f32 %v1484, %v1644
      %v1646 = vpop.f32.mrb[0].mxu0
      %v1647 = vpop.f32.mrb[0].mxu0
      %v1648 = vadd.f32 %v1487, %v1647
      %v1649 = vpop.f32.mrb[0].mxu0
      %1650 = vdwg.mxu0
      %v1651 = vadd.f32 %v304, %v1525
      %v1652 = vadd.f32 %v305, %v1528
      %v1653 = vadd.f32 %v306, %v1533
      %v1654 = vadd.f32 %v307, %v1536
      %v1655 = vadd.f32 %v308, %v1541
      %v1656 = vadd.f32 %v309, %v1544
      %v1657 = vadd.f32 %v310, %v1549
      %v1658 = vadd.f32 %v311, %v1552
      %v1659 = vadd.f32 %v312, %v1557
      %v1660 = vadd.f32 %v313, %v1560
      %v1661 = vadd.f32 %v314, %v1565
      %v1662 = vadd.f32 %v315, %v1568
      %v1663 = vadd.f32 %v316, %v1573
      %v1664 = vadd.f32 %v317, %v1576
      %v1665 = vadd.f32 %v318, %v1581
      %v1666 = vadd.f32 %v319, %v1584
      %v1667 = vadd.f32 %v320, %v1589
      %v1668 = vadd.f32 %v321, %v1592
      %v1669 = vadd.f32 %v322, %v1597
      %v1670 = vadd.f32 %v323, %v1600
      %v1671 = vadd.f32 %v324, %v1605
      %v1672 = vadd.f32 %v325, %v1608
      %v1673 = vadd.f32 %v326, %v1613
      %v1674 = vadd.f32 %v327, %v1616
      %v1675 = vadd.f32 %v328, %v1621
      %v1676 = vadd.f32 %v329, %v1624
      %v1677 = vadd.f32 %v330, %v1629
      %v1678 = vadd.f32 %v331, %v1632
      %v1679 = vadd.f32 %v332, %v1637
      %v1680 = vadd.f32 %v333, %v1640
      %v1681 = vadd.f32 %v334, %v1645
      %v1682 = vadd.f32 %v335, %v1648
      %1683 = vst [vmem:[#allocation2] sm:$0xff] %v1651
      %1684 = vst [vmem:[#allocation2 + $0x8] sm:$0xff] %v1652
      %1685 = vst [vmem:[#allocation2 + $0x10] sm:$0xff] %v1653
      %1686 = vst [vmem:[#allocation2 + $0x18] sm:$0xff] %v1654
      %1687 = vst [vmem:[#allocation2 + $0x20] sm:$0xff] %v1655
      %1688 = vst [vmem:[#allocation2 + $0x28] sm:$0xff] %v1656
      %1689 = vst [vmem:[#allocation2 + $0x30] sm:$0xff] %v1657
      %1690 = vst [vmem:[#allocation2 + $0x38] sm:$0xff] %v1658
      %1691 = vst [vmem:[#allocation2 + $0x40] sm:$0xff] %v1659
      %1692 = vst [vmem:[#allocation2 + $0x48] sm:$0xff] %v1660
      %1693 = vst [vmem:[#allocation2 + $0x50] sm:$0xff] %v1661
      %1694 = vst [vmem:[#allocation2 + $0x58] sm:$0xff] %v1662
      %1695 = vst [vmem:[#allocation2 + $0x60] sm:$0xff] %v1663
      %1696 = vst [vmem:[#allocation2 + $0x68] sm:$0xff] %v1664
      %1697 = vst [vmem:[#allocation2 + $0x70] sm:$0xff] %v1665
      %1698 = vst [vmem:[#allocation2 + $0x78] sm:$0xff] %v1666
      %1699 = vst [vmem:[#allocation2 + $0x80] sm:$0xff] %v1667
      %1700 = vst [vmem:[#allocation2 + $0x88] sm:$0xff] %v1668
      %1701 = vst [vmem:[#allocation2 + $0x90] sm:$0xff] %v1669
      %1702 = vst [vmem:[#allocation2 + $0x98] sm:$0xff] %v1670
      %1703 = vst [vmem:[#allocation2 + $0xa0] sm:$0xff] %v1671
      %1704 = vst [vmem:[#allocation2 + $0xa8] sm:$0xff] %v1672
      %1705 = vst [vmem:[#allocation2 + $0xb0] sm:$0xff] %v1673
      %1706 = vst [vmem:[#allocation2 + $0xb8] sm:$0xff] %v1674
      %1707 = vst [vmem:[#allocation2 + $0xc0] sm:$0xff] %v1675
      %1708 = vst [vmem:[#allocation2 + $0xc8] sm:$0xff] %v1676
      %1709 = vst [vmem:[#allocation2 + $0xd0] sm:$0xff] %v1677
      %1710 = vst [vmem:[#allocation2 + $0xd8] sm:$0xff] %v1678
      %1711 = vst [vmem:[#allocation2 + $0xe0] sm:$0xff] %v1679
      %1712 = vst [vmem:[#allocation2 + $0xe8] sm:$0xff] %v1680
      %1713 = vst [vmem:[#allocation2 + $0xf0] sm:$0xff] %v1681
      %1714 = vst [vmem:[#allocation2 + $0xf8] sm:$0xff] %v1682
      // Predicated region
      $region37: #{decoder_forward.7} parent=31 // pred_check
        %p1715 = pneg %p268
      $region38: #{decoder_forward.7} parent=31 // pred_check_branch
        %1717 = sbr.rel (%p1715) target = $region40
      $region39: #{decoder_forward.7} parent=31 // pred_region
        %v1718 = vld [vmem:[#allocation2] sm:$0xff]
        %v1719 = vld [vmem:[#allocation2 + $0x8] sm:$0xff]
        %v1720 = vld [vmem:[#allocation2 + $0x10] sm:$0xff]
        %v1721 = vld [vmem:[#allocation2 + $0x18] sm:$0xff]
        %v1722 = vld [vmem:[#allocation2 + $0x20] sm:$0xff]
        %v1723 = vld [vmem:[#allocation2 + $0x28] sm:$0xff]
        %v1724 = vld [vmem:[#allocation2 + $0x30] sm:$0xff]
        %v1725 = vld [vmem:[#allocation2 + $0x38] sm:$0xff]
        %v1726 = vld [vmem:[#allocation2 + $0x40] sm:$0xff]
        %v1727 = vld [vmem:[#allocation2 + $0x48] sm:$0xff]
        %v1728 = vld [vmem:[#allocation2 + $0x50] sm:$0xff]
        %v1729 = vld [vmem:[#allocation2 + $0x58] sm:$0xff]
        %v1730 = vld [vmem:[#allocation2 + $0x60] sm:$0xff]
        %v1731 = vld [vmem:[#allocation2 + $0x68] sm:$0xff]
        %v1732 = vld [vmem:[#allocation2 + $0x70] sm:$0xff]
        %v1733 = vld [vmem:[#allocation2 + $0x78] sm:$0xff]
        %v1734 = vld [vmem:[#allocation2 + $0x80] sm:$0xff]
        %v1735 = vld [vmem:[#allocation2 + $0x88] sm:$0xff]
        %v1736 = vld [vmem:[#allocation2 + $0x90] sm:$0xff]
        %v1737 = vld [vmem:[#allocation2 + $0x98] sm:$0xff]
        %v1738 = vld [vmem:[#allocation2 + $0xa0] sm:$0xff]
        %v1739 = vld [vmem:[#allocation2 + $0xa8] sm:$0xff]
        %v1740 = vld [vmem:[#allocation2 + $0xb0] sm:$0xff]
        %v1741 = vld [vmem:[#allocation2 + $0xb8] sm:$0xff]
        %v1742 = vld [vmem:[#allocation2 + $0xc0] sm:$0xff]
        %v1743 = vld [vmem:[#allocation2 + $0xc8] sm:$0xff]
        %v1744 = vld [vmem:[#allocation2 + $0xd0] sm:$0xff]
        %v1745 = vld [vmem:[#allocation2 + $0xd8] sm:$0xff]
        %v1746 = vld [vmem:[#allocation2 + $0xe0] sm:$0xff]
        %v1747 = vld [vmem:[#allocation2 + $0xe8] sm:$0xff]
        %v1748 = vld [vmem:[#allocation2 + $0xf0] sm:$0xff]
        %v1749 = vld [vmem:[#allocation2 + $0xf8] sm:$0xff]
        %v1750 = vld [vmem:[%s257] sm:$0x1]
        %v1752 = vlaneseq
        %v1753 = vshrl.u32 %v1752, 7
        %v1754 = vsub.s32 0, %v1753
        %v1755 = vrot.slane %v1750, %v1754
        %v1757 = vadd.f32 %v1718, %v1755
        %v1758 = vadd.f32 %v1719, %v1755
        %v1759 = vadd.f32 %v1720, %v1755
        %v1760 = vadd.f32 %v1721, %v1755
        %v1761 = vadd.f32 %v1722, %v1755
        %v1762 = vadd.f32 %v1723, %v1755
        %v1763 = vadd.f32 %v1724, %v1755
        %v1764 = vadd.f32 %v1725, %v1755
        %v1765 = vadd.f32 %v1726, %v1755
        %v1766 = vadd.f32 %v1727, %v1755
        %v1767 = vadd.f32 %v1728, %v1755
        %v1768 = vadd.f32 %v1729, %v1755
        %v1769 = vadd.f32 %v1730, %v1755
        %v1770 = vadd.f32 %v1731, %v1755
        %v1771 = vadd.f32 %v1732, %v1755
        %v1772 = vadd.f32 %v1733, %v1755
        %v1773 = vadd.f32 %v1734, %v1755
        %v1774 = vadd.f32 %v1735, %v1755
        %v1775 = vadd.f32 %v1736, %v1755
        %v1776 = vadd.f32 %v1737, %v1755
        %v1777 = vadd.f32 %v1738, %v1755
        %v1778 = vadd.f32 %v1739, %v1755
        %v1779 = vadd.f32 %v1740, %v1755
        %v1780 = vadd.f32 %v1741, %v1755
        %v1781 = vadd.f32 %v1742, %v1755
        %v1782 = vadd.f32 %v1743, %v1755
        %v1783 = vadd.f32 %v1744, %v1755
        %v1784 = vadd.f32 %v1745, %v1755
        %v1785 = vadd.f32 %v1746, %v1755
        %v1786 = vadd.f32 %v1747, %v1755
        %v1787 = vadd.f32 %v1748, %v1755
        %v1788 = vadd.f32 %v1749, %v1755
        %1789 = vst [vmem:[%s265] sm:$0xff] %v1757
        %1790 = vst [vmem:[%s265 + $0x8] sm:$0xff] %v1758
        %1791 = vst [vmem:[%s265 + $0x10] sm:$0xff] %v1759
        %1792 = vst [vmem:[%s265 + $0x18] sm:$0xff] %v1760
        %1793 = vst [vmem:[%s265 + $0x20] sm:$0xff] %v1761
        %1794 = vst [vmem:[%s265 + $0x28] sm:$0xff] %v1762
        %1795 = vst [vmem:[%s265 + $0x30] sm:$0xff] %v1763
        %1796 = vst [vmem:[%s265 + $0x38] sm:$0xff] %v1764
        %1797 = vst [vmem:[%s265 + $0x40] sm:$0xff] %v1765
        %1798 = vst [vmem:[%s265 + $0x48] sm:$0xff] %v1766
        %1799 = vst [vmem:[%s265 + $0x50] sm:$0xff] %v1767
        %1800 = vst [vmem:[%s265 + $0x58] sm:$0xff] %v1768
        %1801 = vst [vmem:[%s265 + $0x60] sm:$0xff] %v1769
        %1802 = vst [vmem:[%s265 + $0x68] sm:$0xff] %v1770
        %1803 = vst [vmem:[%s265 + $0x70] sm:$0xff] %v1771
        %1804 = vst [vmem:[%s265 + $0x78] sm:$0xff] %v1772
        %1805 = vst [vmem:[%s265 + $0x80] sm:$0xff] %v1773
        %1806 = vst [vmem:[%s265 + $0x88] sm:$0xff] %v1774
        %1807 = vst [vmem:[%s265 + $0x90] sm:$0xff] %v1775
        %1808 = vst [vmem:[%s265 + $0x98] sm:$0xff] %v1776
        %1809 = vst [vmem:[%s265 + $0xa0] sm:$0xff] %v1777
        %1810 = vst [vmem:[%s265 + $0xa8] sm:$0xff] %v1778
        %1811 = vst [vmem:[%s265 + $0xb0] sm:$0xff] %v1779
        %1812 = vst [vmem:[%s265 + $0xb8] sm:$0xff] %v1780
        %1813 = vst [vmem:[%s265 + $0xc0] sm:$0xff] %v1781
        %1814 = vst [vmem:[%s265 + $0xc8] sm:$0xff] %v1782
        %1815 = vst [vmem:[%s265 + $0xd0] sm:$0xff] %v1783
        %1816 = vst [vmem:[%s265 + $0xd8] sm:$0xff] %v1784
        %1817 = vst [vmem:[%s265 + $0xe0] sm:$0xff] %v1785
        %1818 = vst [vmem:[%s265 + $0xe8] sm:$0xff] %v1786
        %1819 = vst [vmem:[%s265 + $0xf0] sm:$0xff] %v1787
        %1820 = vst [vmem:[%s265 + $0xf8] sm:$0xff] %v1788
      $region40: #{decoder_forward.7} parent=31 // pred_fallthru
        _
      %s1821 = smul.u32 32, %s19
      %p1822 = scmp.lt.s32.totalorder %s1821, 63
      %s1823 = scalar_select %p1822, %s1821, 63
      %p1824 = scmp.lt.s32.totalorder %s20, 0
      %s1825 = scalar_select %p1824, %s20, 0
      %s1826 = sadd.s32 %s1825, %s1823
      %s1827 = smul.addr %s1826, 8
      %s1828 = scalar_lea.vmem %s3, %s1827
      // Predicated region
      $region41: #{decoder_forward.7} parent=31 // pred_check
        %p1829 = pneg %p135
      $region42: #{decoder_forward.7} parent=31 // pred_check_branch
        %1831 = sbr.rel (%p1829) target = $region44
      $region43: #{decoder_forward.7} parent=31 // pred_region
        %s1832 = smul.u32 32, %s19
      $region44: #{decoder_forward.7} parent=31 // pred_fallthru
        _
    $region32: #{decoder_forward.7} parent=5 // pred_fallthru
      _
    %p1833 = scmp.le.s32.totalorder 2, %s9
    // Predicated region
    $region45: #{decoder_forward.7} parent=5 // pred_check
      %p1834 = pneg %p1833
    $region46: #{decoder_forward.7} parent=5 // pred_check_branch
      %1836 = sbr.rel (%p1834) target = $region48
    $region47: #{decoder_forward.7} parent=5 // pred_region
      %s1837 = ssub.s32 %s9, 2
      // Predicated region
      $region49: #{decoder_forward.7} parent=47 // pred_check
        %p1838 = pneg %p141
      $region50: #{decoder_forward.7} parent=47 // pred_check_branch
        %1840 = sbr.rel (%p1838) target = $region52
      $region51: #{decoder_forward.7} parent=47 // pred_region
        %s1841 = smul.u32 32, %s22
        %p1842 = scmp.lt.s32.totalorder %s1841, 63
        %s1843 = scalar_select %p1842, %s1841, 63
        %p1844 = scmp.lt.s32.totalorder %s23, 0
        %s1845 = scalar_select %p1844, %s23, 0
        %s1846 = sadd.s32 %s1845, %s1843
        %s1847 = smul.addr %s1846, 8
        %s1848 = scalar_lea.vmem %s3, %s1847
      $region52: #{decoder_forward.7} parent=47 // pred_fallthru
        _
    $region48: #{decoder_forward.7} parent=5 // pred_fallthru
      _
  $region6: #{decoder_forward.7} parent=0 // loop_footer
    %s13 = sadd.s32 1, %s9
  $region7: #{decoder_forward.7} parent=0 // loop_footer_branch
    %8 = sbr.rel target = $region3
  $region8: #{decoder_forward.7} parent=0 // loop_exit
    _

</llo_original>
